<compile_context>
chip_gen: v6e
topology: v6e:2x2x1
jax: 0.10.0
libtpu: 0.0.40
codegen_flags: <defaults>
</compile_context>

<pallas_src>
import jax
import jax.numpy as jnp
from jax import lax
from jax.experimental import pallas as pl
from jax.experimental.pallas import tpu as pltpu
import numpy as np


# ----------------------------------------------------------------------------
# Pallas kernel
# ----------------------------------------------------------------------------
def _make_discriminator_kernel(Bh, Wd, R_blk, off_w2, off_w3, off_b, off_g):
    """Bh: samples per block, Wd: grid width, R_blk = 2*Bh*H*W real rows/block."""
    m = Wd + 1           # largest tap offset of a 2x2 valid conv (flattened coords)
    R1 = R_blk + 2 * m   # layer-1 output rows needed by layer 2
    R2 = R_blk + m       # layer-2 output rows needed by layer 3

    def leaky(z):        # LeakyReLU(0.01): mul+max (2 VPU ops) instead of cmp+mul+select
        return jnp.maximum(z, 0.01 * z)

    def im2col(a, rows_out):
        # Tap (kh, kw) of the 2x2 conv reads flattened row n + kh*W + kw.
        # Concatenate the 4 shifted copies along lanes -> one matmul, K = 4*Cin.
        return jnp.concatenate(
            [a[0:rows_out], a[1:rows_out + 1],
             a[Wd:rows_out + Wd], a[m:rows_out + m]], axis=1)

    def kernel(bias_ref, x_ref, w_ref, sel_ref, out_ref):
        # Static slices of the packed bf16 weight slab (64 lanes wide).
        w1 = w_ref[0:off_w2, :]              # (4*C_pad, 64) layer 1, heads fused on lanes
        w2 = w_ref[off_w2:off_w3, :]         # (256, 64)     block-diag (reward | value)
        w3 = w_ref[off_w3:off_b, :]          # (256, 64)     reward->0:16, value->16:32
        b1 = w_ref[off_b + 0:off_b + 1, :].astype(jnp.float32)
        b2 = w_ref[off_b + 1:off_b + 2, :].astype(jnp.float32)
        b3 = w_ref[off_b + 2:off_b + 3, :].astype(jnp.float32)
        lin_grid = w_ref[off_g:off_g + R_blk, :]   # (R_blk, 64) combined Linear grid
                                                   # with gamma / -1 folded in, zero border

        x = x_ref[...]                                            # (R_blk+pad, C_pad) bf16

        h1 = leaky(jnp.dot(im2col(x, R1), w1,
                           preferred_element_type=jnp.float32) + b1).astype(jnp.bfloat16)
        h2 = leaky(jnp.dot(im2col(h1, R2), w2,
                           preferred_element_type=jnp.float32) + b2).astype(jnp.bfloat16)
        h3 = leaky(jnp.dot(im2col(h2, R_blk), w3,
                           preferred_element_type=jnp.float32) + b3).astype(jnp.bfloat16)

        # Final Linear + per-sample reduce + (g + gamma*h_next - h_state) combine:
        # elementwise product with the combined grid, one selection matmul,
        # lane reduce, plus the folded bias scalar.
        prod = h3 * lin_grid                                       # (R_blk, 64) bf16
        per = jnp.dot(sel_ref[...], prod,
                      preferred_element_type=jnp.float32)          # (Bh, 64)  f32
        adv = jnp.sum(per, axis=1, keepdims=True) + bias_ref[0]    # (Bh, 1)
        out_ref[...] = adv.reshape((1, Bh, 1))                     # single write

    return kernel


# ----------------------------------------------------------------------------
# Wrapper: parameter repacking + pallas_call
# ----------------------------------------------------------------------------
def discriminator_forward(params, state_nchw, next_state_nchw, gamma, state_shape):
    H, W = state_shape
    B, C = state_nchw.shape[0], state_nchw.shape[1]
    N = H * W
    m = W + 1
    f32 = jnp.float32
    CO = 64                                   # fused lane width of every layer

    n_blk = 2 if (B % 2 == 0 and B >= 2) else 1   # 2 blocks -> both TCs on v7x
    Bh = B // n_blk
    R_blk = 2 * Bh * N                        # real rows per block (state + next)
    pad = ((3 * m + 15) // 16) * 16           # zero tail so shifted slices stay in bounds
    blk_rows = R_blk + pad
    C_pad = ((max(C, 8) + 7) // 8) * 8

    rp, vp = params["reward"], params["value"]

    # ---- activations: per block [state rows | next rows | zeros], bf16 -----
    def to_rows(x):                           # NCHW -> (B, H*W, C_pad), channels on lanes
        r = jnp.transpose(x, (0, 2, 3, 1)).reshape(B, N, C).astype(f32)
        return jnp.pad(r, ((0, 0), (0, 0), (0, C_pad - C)))

    s_rows, n_rows = to_rows(state_nchw), to_rows(next_state_nchw)
    zpad = jnp.zeros((pad, C_pad), f32)
    blocks = []
    for i in range(n_blk):
        sb = s_rows[i * Bh:(i + 1) * Bh].reshape(Bh * N, C_pad)
        nb = n_rows[i * Bh:(i + 1) * Bh].reshape(Bh * N, C_pad)
        blocks.append(jnp.concatenate([sb, nb, zpad], axis=0))
    x_all = jnp.concatenate(blocks, axis=0).astype(jnp.bfloat16)  # (n_blk*blk_rows, C_pad)

    # ---- fused conv weights (tap-major rows, heads fused on lanes) ---------
    def fuse_l1(wr, wv):                      # (4*C_pad, 64): reward -> 0:32, value -> 32:64
        taps = []
        for kh in range(2):
            for kw in range(2):
                t = jnp.zeros((C_pad, CO), f32)
                t = t.at[:C, 0:32].set(wr[:, :, kh, kw].T.astype(f32))
                t = t.at[:C, 32:64].set(wv[:, :, kh, kw].T.astype(f32))
                taps.append(t)
        return jnp.concatenate(taps, axis=0)

    def fuse_bd(wr, wv):                      # block-diagonal: reward block then value block
        ir, orr = wr.shape[1], wr.shape[0]
        iv, ov = wv.shape[1], wv.shape[0]
        taps = []
        for kh in range(2):
            for kw in range(2):
                t = jnp.zeros((ir + iv, CO), f32)
                t = t.at[0:ir, 0:orr].set(wr[:, :, kh, kw].T.astype(f32))
                t = t.at[ir:ir + iv, orr:orr + ov].set(wv[:, :, kh, kw].T.astype(f32))
                taps.append(t)
        return jnp.concatenate(taps, axis=0)

    w1f = fuse_l1(rp["w1"], vp["w1"])         # (4*C_pad, 64)
    w2f = fuse_bd(rp["w2"], vp["w2"])         # (256, 64)
    w3f = fuse_bd(rp["w3"], vp["w3"])         # (256, 64): reward->0:16, value->16:32

    b1f = jnp.concatenate([rp["b1"], vp["b1"]]).astype(f32)                    # (64,)
    b2f = jnp.concatenate([rp["b2"], vp["b2"]]).astype(f32)                    # (64,)
    b3f = jnp.zeros((CO,), f32).at[0:16].set(rp["b3"]).at[16:32].set(vp["b3"])  # (64,)

    # ---- combined Linear weight grid, gamma / -1 folded in -----------------
    def lin_grid(wo):                         # torch flatten order (C=16, H', W')
        wr_ = wo.reshape(16, H - 3, W - 3).astype(f32)
        full = jnp.zeros((H, W, 16), f32)
        full = full.at[:H - 3, :W - 3, :].set(jnp.transpose(wr_, (1, 2, 0)))
        return full.reshape(N, 16)            # zeros on the invalid conv border

    gr, gv = lin_grid(rp["wo"]), lin_grid(vp["wo"])
    state_part = jnp.zeros((N, CO), f32).at[:, 0:16].set(gr).at[:, 16:32].set(-gv)
    next_part = jnp.zeros((N, CO), f32).at[:, 16:32].set(gamma * gv)
    grid_comb = jnp.concatenate([jnp.tile(state_part, (Bh, 1)),
                                 jnp.tile(next_part, (Bh, 1))], axis=0)  # (R_blk, 64)

    # ---- single packed weight slab (16-row aligned sections) ----------------
    off_w2 = w1f.shape[0]
    off_w3 = off_w2 + w2f.shape[0]
    off_b = off_w3 + w3f.shape[0]
    off_g = ((off_b + 3 + 15) // 16) * 16
    slab_rows = off_g + R_blk
    wslab = jnp.zeros((slab_rows, CO), f32)
    wslab = wslab.at[0:off_w2].set(w1f)
    wslab = wslab.at[off_w2:off_w3].set(w2f)
    wslab = wslab.at[off_w3:off_b].set(w3f)
    wslab = wslab.at[off_b + 0].set(b1f)
    wslab = wslab.at[off_b + 1].set(b2f)
    wslab = wslab.at[off_b + 2].set(b3f)
    wslab = wslab.at[off_g:off_g + R_blk].set(grid_comb)
    wslab = wslab.astype(jnp.bfloat16)

    # ---- precomputed per-sample selection matrix ----------------------------
    sel_np = np.zeros((Bh, R_blk), np.float32)
    for b in range(Bh):
        sel_np[b, b * N:(b + 1) * N] = 1.0                           # state rows of sample b
        sel_np[b, Bh * N + b * N:Bh * N + (b + 1) * N] = 1.0         # next rows of sample b
    sel = jnp.asarray(sel_np, dtype=jnp.bfloat16)

    bias_combo = (rp["bo"].astype(f32) + (gamma - 1.0) * vp["bo"].astype(f32)).reshape(1)

    kernel = _make_discriminator_kernel(Bh, W, R_blk, off_w2, off_w3, off_b, off_g)

    out = pl.pallas_call(
        kernel,
        out_shape=jax.ShapeDtypeStruct((n_blk, Bh, 1), jnp.float32),
        grid=(n_blk,),
        in_specs=[
            pl.BlockSpec(memory_space=pltpu.MemorySpace.SMEM),          # bias scalar
            pl.BlockSpec((blk_rows, C_pad), lambda i: (i, 0)),          # activations (streamed)
            pl.BlockSpec((slab_rows, CO), lambda i: (0, 0)),            # weight slab (resident)
            pl.BlockSpec((Bh, R_blk), lambda i: (0, 0)),                # selection (resident)
        ],
        out_specs=pl.BlockSpec((1, Bh, 1), lambda i: (i, 0, 0)),
        compiler_params=pltpu.CompilerParams(
            dimension_semantics=("parallel",)),                         # 2 TCs on v7x
    )(bias_combo, x_all, wslab, sel)

    return out.reshape(B, 1)


# ----------------------------------------------------------------------------
# Pure-JAX reference (mirrors the PyTorch module exactly) for validation
# ----------------------------------------------------------------------------
def reference_forward(params, state, next_state, gamma):
    hp = lax.Precision.HIGHEST

    def conv(x, w, b):
        y = lax.conv_general_dilated(
            x, w, window_strides=(1, 1), padding="VALID",
            dimension_numbers=("NCHW", "OIHW", "NCHW"), precision=hp)
        return y + b[None, :, None, None]

    def leaky(x):
        return jnp.where(x >= 0, x, 0.01 * x)

    def head(x, p):
        h = leaky(conv(x, p["w1"], p["b1"]))
        h = leaky(conv(h, p["w2"], p["b2"]))
        h = leaky(conv(h, p["w3"], p["b3"]))
        h = h.reshape(h.shape[0], -1)               # flatten order (C, H, W)
        return jnp.dot(h, p["wo"].T, precision=hp) + p["bo"][None, :]

    r = head(state, params["reward"])
    vs = head(state, params["value"])
    vn = head(next_state, params["value"])
    return r + gamma * vn - vs


# ----------------------------------------------------------------------------
# Deterministic synthetic parameters (shapes match Discriminator.__init__,
# latent_dim=None) — NOT a checkpoint load.
# ----------------------------------------------------------------------------
def init_head(key, c_in, H, W):
    ks = jax.random.split(key, 8)
    flat = 16 * (H - 3) * (W - 3)
    n = lambda k, s: 0.1 * jax.random.normal(k, s, jnp.float32)
    return {
        "w1": n(ks[0], (32, c_in, 2, 2)), "b1": n(ks[1], (32,)),
        "w2": n(ks[2], (32, 32, 2, 2)),  "b2": n(ks[3], (32,)),
        "w3": n(ks[4], (16, 32, 2, 2)),  "b3": n(ks[5], (16,)),
        "wo": n(ks[6], (1, flat)),       "bo": n(ks[7], (1,)),
    }


if __name__ == "__main__":
    # Small shapes: batch=2, in_channels=6, state_shape=(8, 8)
    B, C, H, W = 2, 6, 8, 8
    gamma = 0.99

    key = jax.random.PRNGKey(0)
    k_s, k_ns, k_r, k_v = jax.random.split(key, 4)
    state = jax.random.normal(k_s, (B, C, H, W), jnp.float32)
    next_state = jax.random.normal(k_ns, (B, C, H, W), jnp.float32)
    params = {"reward": init_head(k_r, C, H, W), "value": init_head(k_v, C, H, W)}

    # TODO(synk): latent-embedding path (latent_dim is not None) and the
    # eval-mode utopia normalization are not exercised (latent=None, eval=False).

    out = discriminator_forward(params, state, next_state, gamma, (H, W))
    out = jax.block_until_ready(out)

    ref = reference_forward(params, state, next_state, gamma)
    ref = jax.block_until_ready(ref)

    # bf16 operands (f32 accumulation) -> bf16-appropriate tolerance.
    np.testing.assert_allclose(np.asarray(out), np.asarray(ref),
                               rtol=5e-2, atol=3e-2)
    print("KERNEL_OK")
</pallas_src>

<mosaic_0001>
module attributes {stable_mosaic.version = 11 : i64} {
  func.func @kernel(%arg0: i32, %arg1: memref<1xf32, #tpu.memory_space<smem>>, %arg2: memref<160x8xbf16, #tpu.memory_space<vmem>>, %arg3: memref<688x64xbf16, #tpu.memory_space<vmem>>, %arg4: memref<1x128xbf16, #tpu.memory_space<vmem>>, %arg5: memref<1x1x1xf32, #tpu.memory_space<vmem>>) attributes {dimension_semantics = [#tpu.dimension_semantics<parallel>], iteration_bounds = array<i64: 2>, scalar_prefetch = 0 : i64, scratch_operands = 0 : i64, tpu.core_type = #tpu.core_type<tc>, window_params = [{transform_indices = @transform_0, window_bounds = array<i64: 1>}, {transform_indices = @transform_1, window_bounds = array<i64: 160, 8>}, {pipeline_mode = #tpu.pipeline_mode<synchronous>, transform_indices = @transform_2, window_bounds = array<i64: 688, 64>}, {pipeline_mode = #tpu.pipeline_mode<synchronous>, transform_indices = @transform_3, window_bounds = array<i64: 1, 128>}, {transform_indices = @transform_4, window_bounds = array<i64: 1, 1, 1>}]} {
    %c0 = arith.constant 0 : index
    %c0_0 = arith.constant 0 : index
    %0 = vector.load %arg3[%c0, %c0_0] : memref<688x64xbf16, #tpu.memory_space<vmem>>, vector<32x64xbf16>
    %c32 = arith.constant 32 : index
    %c0_1 = arith.constant 0 : index
    %1 = vector.load %arg3[%c32, %c0_1] : memref<688x64xbf16, #tpu.memory_space<vmem>>, vector<256x64xbf16>
    %c288 = arith.constant 288 : index
    %c0_2 = arith.constant 0 : index
    %2 = vector.load %arg3[%c288, %c0_2] : memref<688x64xbf16, #tpu.memory_space<vmem>>, vector<256x64xbf16>
    %c544 = arith.constant 544 : index
    %c0_3 = arith.constant 0 : index
    %3 = vector.load %arg3[%c544, %c0_3] : memref<688x64xbf16, #tpu.memory_space<vmem>>, vector<1x64xbf16>
    %4 = arith.extf %3 : vector<1x64xbf16> to vector<1x64xf32>
    %c545 = arith.constant 545 : index
    %c0_4 = arith.constant 0 : index
    %5 = vector.load %arg3[%c545, %c0_4] : memref<688x64xbf16, #tpu.memory_space<vmem>>, vector<1x64xbf16>
    %6 = arith.extf %5 : vector<1x64xbf16> to vector<1x64xf32>
    %c546 = arith.constant 546 : index
    %c0_5 = arith.constant 0 : index
    %7 = vector.load %arg3[%c546, %c0_5] : memref<688x64xbf16, #tpu.memory_space<vmem>>, vector<1x64xbf16>
    %8 = arith.extf %7 : vector<1x64xbf16> to vector<1x64xf32>
    %c560 = arith.constant 560 : index
    %c0_6 = arith.constant 0 : index
    %9 = vector.load %arg3[%c560, %c0_6] : memref<688x64xbf16, #tpu.memory_space<vmem>>, vector<128x64xbf16>
    %c0_7 = arith.constant 0 : index
    %c0_8 = arith.constant 0 : index
    %10 = vector.load %arg2[%c0_7, %c0_8] : memref<160x8xbf16, #tpu.memory_space<vmem>>, vector<160x8xbf16>
    %11 = vector.extract_strided_slice %10 {offsets = [0, 0], sizes = [146, 8], strides = [1, 1]} : vector<160x8xbf16> to vector<146x8xbf16>
    %12 = vector.extract_strided_slice %10 {offsets = [1, 0], sizes = [146, 8], strides = [1, 1]} : vector<160x8xbf16> to vector<146x8xbf16>
    %13 = vector.extract_strided_slice %10 {offsets = [8, 0], sizes = [146, 8], strides = [1, 1]} : vector<160x8xbf16> to vector<146x8xbf16>
    %14 = vector.extract_strided_slice %10 {offsets = [9, 0], sizes = [146, 8], strides = [1, 1]} : vector<160x8xbf16> to vector<146x8xbf16>
    %15 = tpu.concatenate %11, %12, %13, %14 in 1 : vector<146x8xbf16>, vector<146x8xbf16>, vector<146x8xbf16>, vector<146x8xbf16> -> vector<146x32xbf16>
    %cst = arith.constant dense<0.000000e+00> : vector<146x64xf32>
    %16 = tpu.matmul %15, %0, %cst {dimension_numbers = #tpu.dot_dimension_numbers<[1], [0], [0], [1], [0, 0, 1, 1], [], []>} : vector<146x32xbf16>, vector<32x64xbf16>, vector<146x64xf32> -> vector<146x64xf32>
    %17 = vector.broadcast %4 : vector<1x64xf32> to vector<146x64xf32>
    %18 = arith.addf %16, %17 : vector<146x64xf32>
    %cst_9 = arith.constant 0.00999999977 : f32
    %19 = vector.broadcast %cst_9 : f32 to vector<146x64xf32>
    %20 = arith.mulf %19, %18 : vector<146x64xf32>
    %21 = arith.maximumf %18, %20 : vector<146x64xf32>
    %22 = arith.truncf %21 : vector<146x64xf32> to vector<146x64xbf16>
    %23 = vector.extract_strided_slice %22 {offsets = [0, 0], sizes = [137, 64], strides = [1, 1]} : vector<146x64xbf16> to vector<137x64xbf16>
    %24 = vector.extract_strided_slice %22 {offsets = [1, 0], sizes = [137, 64], strides = [1, 1]} : vector<146x64xbf16> to vector<137x64xbf16>
    %25 = vector.extract_strided_slice %22 {offsets = [8, 0], sizes = [137, 64], strides = [1, 1]} : vector<146x64xbf16> to vector<137x64xbf16>
    %26 = vector.extract_strided_slice %22 {offsets = [9, 0], sizes = [137, 64], strides = [1, 1]} : vector<146x64xbf16> to vector<137x64xbf16>
    %27 = tpu.concatenate %23, %24, %25, %26 in 1 : vector<137x64xbf16>, vector<137x64xbf16>, vector<137x64xbf16>, vector<137x64xbf16> -> vector<137x256xbf16>
    %cst_10 = arith.constant dense<0.000000e+00> : vector<137x64xf32>
    %28 = tpu.matmul %27, %1, %cst_10 {dimension_numbers = #tpu.dot_dimension_numbers<[1], [0], [0], [1], [0, 0, 1, 1], [], []>} : vector<137x256xbf16>, vector<256x64xbf16>, vector<137x64xf32> -> vector<137x64xf32>
    %29 = vector.broadcast %6 : vector<1x64xf32> to vector<137x64xf32>
    %30 = arith.addf %28, %29 : vector<137x64xf32>
    %cst_11 = arith.constant 0.00999999977 : f32
    %31 = vector.broadcast %cst_11 : f32 to vector<137x64xf32>
    %32 = arith.mulf %31, %30 : vector<137x64xf32>
    %33 = arith.maximumf %30, %32 : vector<137x64xf32>
    %34 = arith.truncf %33 : vector<137x64xf32> to vector<137x64xbf16>
    %35 = vector.extract_strided_slice %34 {offsets = [0, 0], sizes = [128, 64], strides = [1, 1]} : vector<137x64xbf16> to vector<128x64xbf16>
    %36 = vector.extract_strided_slice %34 {offsets = [1, 0], sizes = [128, 64], strides = [1, 1]} : vector<137x64xbf16> to vector<128x64xbf16>
    %37 = vector.extract_strided_slice %34 {offsets = [8, 0], sizes = [128, 64], strides = [1, 1]} : vector<137x64xbf16> to vector<128x64xbf16>
    %38 = vector.extract_strided_slice %34 {offsets = [9, 0], sizes = [128, 64], strides = [1, 1]} : vector<137x64xbf16> to vector<128x64xbf16>
    %39 = tpu.concatenate %35, %36, %37, %38 in 1 : vector<128x64xbf16>, vector<128x64xbf16>, vector<128x64xbf16>, vector<128x64xbf16> -> vector<128x256xbf16>
    %cst_12 = arith.constant dense<0.000000e+00> : vector<128x64xf32>
    %40 = tpu.matmul %39, %2, %cst_12 {dimension_numbers = #tpu.dot_dimension_numbers<[1], [0], [0], [1], [0, 0, 1, 1], [], []>} : vector<128x256xbf16>, vector<256x64xbf16>, vector<128x64xf32> -> vector<128x64xf32>
    %41 = vector.broadcast %8 : vector<1x64xf32> to vector<128x64xf32>
    %42 = arith.addf %40, %41 : vector<128x64xf32>
    %cst_13 = arith.constant 0.00999999977 : f32
    %43 = vector.broadcast %cst_13 : f32 to vector<128x64xf32>
    %44 = arith.mulf %43, %42 : vector<128x64xf32>
    %45 = arith.maximumf %42, %44 : vector<128x64xf32>
    %46 = arith.truncf %45 : vector<128x64xf32> to vector<128x64xbf16>
    %47 = arith.mulf %46, %9 : vector<128x64xbf16>
    %c0_14 = arith.constant 0 : index
    %c0_15 = arith.constant 0 : index
    %48 = vector.load %arg4[%c0_14, %c0_15] : memref<1x128xbf16, #tpu.memory_space<vmem>>, vector<1x128xbf16>
    %cst_16 = arith.constant dense<0.000000e+00> : vector<1x64xf32>
    %49 = tpu.matmul %48, %47, %cst_16 {dimension_numbers = #tpu.dot_dimension_numbers<[1], [0], [0], [1], [0, 0, 1, 1], [], []>} : vector<1x128xbf16>, vector<128x64xbf16>, vector<1x64xf32> -> vector<1x64xf32>
    %cst_17 = arith.constant dense<0.000000e+00> : vector<1xf32>
    %50 = vector.multi_reduction <add>, %49, %cst_17 [1] : vector<1x64xf32> to vector<1xf32>
    %51 = vector.shape_cast %50 : vector<1xf32> to vector<1x1xf32>
    %c0_18 = arith.constant 0 : index
    %52 = memref.load %arg1[%c0_18] : memref<1xf32, #tpu.memory_space<smem>>
    %53 = vector.broadcast %52 : f32 to vector<1x1xf32>
    %54 = arith.addf %51, %53 : vector<1x1xf32>
    %55 = vector.shape_cast %54 : vector<1x1xf32> to vector<1x1x1xf32>
    %c0_19 = arith.constant 0 : index
    %c0_20 = arith.constant 0 : index
    %c0_21 = arith.constant 0 : index
    %56 = vector.load %arg5[%c0_19, %c0_20, %c0_21] : memref<1x1x1xf32, #tpu.memory_space<vmem>>, vector<1x1x1xf32>
    tpu.vector_store %arg5[%c0_19, %c0_20, %c0_21], %55 {strides = array<i32>} : memref<1x1x1xf32, #tpu.memory_space<vmem>>, vector<1x1x1xf32>,
    return
  }
  func.func @transform_0(%arg0: i32) -> i32 {
    %c0_i32 = arith.constant 0 : i32
    %c0_i32_0 = arith.constant 0 : i32
    return %c0_i32 : i32
  }
  func.func @transform_1(%arg0: i32) -> (i32, i32) {
    %c0_i32 = arith.constant 0 : i32
    %c0_i32_0 = arith.constant 0 : i32
    return %arg0, %c0_i32 : i32, i32
  }
  func.func @transform_2(%arg0: i32) -> (i32, i32) {
    %c0_i32 = arith.constant 0 : i32
    %c0_i32_0 = arith.constant 0 : i32
    %c0_i32_1 = arith.constant 0 : i32
    return %c0_i32, %c0_i32_0 : i32, i32
  }
  func.func @transform_3(%arg0: i32) -> (i32, i32) {
    %c0_i32 = arith.constant 0 : i32
    %c0_i32_0 = arith.constant 0 : i32
    %c0_i32_1 = arith.constant 0 : i32
    return %c0_i32, %c0_i32_0 : i32, i32
  }
  func.func @transform_4(%arg0: i32) -> (i32, i32, i32) {
    %c0_i32 = arith.constant 0 : i32
    %c0_i32_0 = arith.constant 0 : i32
    %c0_i32_1 = arith.constant 0 : i32
    return %arg0, %c0_i32, %c0_i32_0 : i32, i32, i32
  }
}

</mosaic_0001>

<llo_original>
// kernel: tpu_custom_call.1
$region0: #{tpu_custom_call.1}
  #allocation0 [shape = 'u32[]', space=smem, size = 0x4, offset = 0x4, fixed_abs, tag = 'smem constant byte address 0x4 - core index']
  #allocation1 [shape = 'u32[144,128]{1,0:T(1,128)}', space=vmem, size = 0x12000, scoped, tag = 'internal scratch']
  #allocation2 [shape = 'f32[1]{0:T(128)S(6)}', space=smem, size = 0x200, scoped, tag = 'scoped memory for tpu_custom_call.1']
  %s0 = inlined_call_operand.<no memory space> [shape: f32[1], index: 0, kind: input, shape index: {}]
  %s1 = inlined_call_operand.vmem [shape: bf16[320,8], index: 1, kind: input, shape index: {}]
  %s2 = inlined_call_operand.vmem [shape: bf16[688,64], index: 2, kind: input, shape index: {}]
  %s3 = inlined_call_operand.vmem [shape: bf16[1,128], index: 3, kind: input, shape index: {}]
  %s4 = inlined_call_operand.vmem [shape: f32[2,1,1], index: 4, kind: output, shape index: {}]
  %s5 = sld [smem:[#allocation0]]
  $region49: #{tpu_custom_call.1} parent=0
    _
  %s7 = ssub.s32 1, %s5
  %s8 = scalar_select 0, %s7, %s5
  %9 = sst [smem:[#allocation2]] %s0
  loop: start=0, step=1, limit=4
  $region2: #{tpu_custom_call.1} parent=0 // loop_pre_header
    _
  $region3: #{tpu_custom_call.1} parent=0 // loop_header
    %s11 = sphi 0, %s15
    %p12 = scmp.ge.s32.totalorder %s11, 4
    %s19 = sphi 0, %s19
    %s21 = sphi 0, %s19
    %s22 = sphi 0, %s21
    %s36 = sphi 0, %s22
    %s42 = sphi 0, %s44
    %s45 = sphi 0, %s42
    %s46 = sphi 0, %s45
    %s62 = sphi 0, %s46
    %s66 = sphi 0, %s66
    %s68 = sphi 0, %s66
    %s69 = sphi 0, %s68
    %s83 = sphi 0, %s69
    %s87 = sphi 0, %s87
    %s89 = sphi 0, %s87
    %s90 = sphi 0, %s89
    %s104 = sphi 0, %s90
    %s110 = sphi 0, %s112
    %s113 = sphi 0, %s110
    %s114 = sphi 0, %s113
    %s130 = sphi 0, %s114
  $region4: #{tpu_custom_call.1} parent=0 // loop_header_branch
    %14 = sbr.rel (%p12) target = $region8
  $region5: #{tpu_custom_call.1} parent=0 // loop_body
    %s16 = ssub.s32 %s11, 1
    %s17 = ssub.s32 %s11, 2
    %s18 = sadd.s32 %s11, 1
    %s20 = sadd.s32 %s19, 1
    %p23 = scmp.eq.s32.totalorder %s11, 1
    %p24 = scmp.ne.s32.totalorder %s19, %s21
    %p25 = scmp.eq.s32.totalorder %s11, 0
    %p26 = por %p24, %p25
    %p27 = scmp.ne.s32.totalorder %s19, %s21
    %p28 = scmp.eq.s32.totalorder %s16, 1
    %p29 = por %p27, %p28
    %p30 = scmp.ne.s32.totalorder %s21, %s22
    %p31 = scmp.eq.s32.totalorder %s16, 0
    %p32 = por %p30, %p31
    %p33 = scmp.ne.s32.totalorder %s21, %s22
    %p34 = scmp.eq.s32.totalorder %s17, 1
    %p35 = por %p33, %p34
    %p37 = scmp.ne.s32.totalorder %s22, %s36
    %p38 = scmp.eq.s32.totalorder %s17, 0
    %p39 = por %p37, %p38
    %s40 = ssub.s32 %s11, %s18
    %p41 = scmp.eq.s32.totalorder %s40, 0
    %s43 = sadd.s32 %s42, 1
    %s44 = scalar_select %p41, %s42, %s43
    %p47 = pneg %p41
    %p48 = scmp.eq.s32.totalorder %s11, 1
    %p49 = por %p47, %p48
    %p50 = scmp.ne.s32.totalorder %s42, %s45
    %p51 = scmp.eq.s32.totalorder %s11, 0
    %p52 = por %p50, %p51
    %p53 = scmp.ne.s32.totalorder %s42, %s45
    %p54 = scmp.eq.s32.totalorder %s16, 1
    %p55 = por %p53, %p54
    %p56 = scmp.ne.s32.totalorder %s45, %s46
    %p57 = scmp.eq.s32.totalorder %s16, 0
    %p58 = por %p56, %p57
    %p59 = scmp.ne.s32.totalorder %s45, %s46
    %p60 = scmp.eq.s32.totalorder %s17, 1
    %p61 = por %p59, %p60
    %p63 = scmp.ne.s32.totalorder %s46, %s62
    %p64 = scmp.eq.s32.totalorder %s17, 0
    %p65 = por %p63, %p64
    %s67 = sadd.s32 %s66, 1
    %p70 = scmp.eq.s32.totalorder %s11, 1
    %p71 = scmp.ne.s32.totalorder %s66, %s68
    %p72 = scmp.eq.s32.totalorder %s11, 0
    %p73 = por %p71, %p72
    %p74 = scmp.ne.s32.totalorder %s66, %s68
    %p75 = scmp.eq.s32.totalorder %s16, 1
    %p76 = por %p74, %p75
    %p77 = scmp.ne.s32.totalorder %s68, %s69
    %p78 = scmp.eq.s32.totalorder %s16, 0
    %p79 = por %p77, %p78
    %p80 = scmp.ne.s32.totalorder %s68, %s69
    %p81 = scmp.eq.s32.totalorder %s17, 1
    %p82 = por %p80, %p81
    %p84 = scmp.ne.s32.totalorder %s69, %s83
    %p85 = scmp.eq.s32.totalorder %s17, 0
    %p86 = por %p84, %p85
    %s88 = sadd.s32 %s87, 1
    %p91 = scmp.eq.s32.totalorder %s11, 1
    %p92 = scmp.ne.s32.totalorder %s87, %s89
    %p93 = scmp.eq.s32.totalorder %s11, 0
    %p94 = por %p92, %p93
    %p95 = scmp.ne.s32.totalorder %s87, %s89
    %p96 = scmp.eq.s32.totalorder %s16, 1
    %p97 = por %p95, %p96
    %p98 = scmp.ne.s32.totalorder %s89, %s90
    %p99 = scmp.eq.s32.totalorder %s16, 0
    %p100 = por %p98, %p99
    %p101 = scmp.ne.s32.totalorder %s89, %s90
    %p102 = scmp.eq.s32.totalorder %s17, 1
    %p103 = por %p101, %p102
    %p105 = scmp.ne.s32.totalorder %s90, %s104
    %p106 = scmp.eq.s32.totalorder %s17, 0
    %p107 = por %p105, %p106
    %s108 = ssub.s32 %s11, %s18
    %p109 = scmp.eq.s32.totalorder %s108, 0
    %s111 = sadd.s32 %s110, 1
    %s112 = scalar_select %p109, %s110, %s111
    %p115 = pneg %p109
    %p116 = scmp.eq.s32.totalorder %s11, 1
    %p117 = por %p115, %p116
    %p118 = scmp.ne.s32.totalorder %s110, %s113
    %p119 = scmp.eq.s32.totalorder %s11, 0
    %p120 = por %p118, %p119
    %p121 = scmp.ne.s32.totalorder %s110, %s113
    %p122 = scmp.eq.s32.totalorder %s16, 1
    %p123 = por %p121, %p122
    %p124 = scmp.ne.s32.totalorder %s113, %s114
    %p125 = scmp.eq.s32.totalorder %s16, 0
    %p126 = por %p124, %p125
    %p127 = scmp.ne.s32.totalorder %s113, %s114
    %p128 = scmp.eq.s32.totalorder %s17, 1
    %p129 = por %p127, %p128
    %p131 = scmp.ne.s32.totalorder %s114, %s130
    %p132 = scmp.eq.s32.totalorder %s17, 0
    %p133 = por %p131, %p132
    %p134 = scmp.le.s32.totalorder 1, %s11
    %p135 = scmp.lt.s32.totalorder %s11, 3
    %p136 = pnand %p134, %p135
    %p137 = pneg %p136
    // Predicated region
    $region9: #{tpu_custom_call.1} parent=5 // pred_check
      _
    $region10: #{tpu_custom_call.1} parent=5 // pred_check_branch
      %139 = sbr.rel (%p136) target = $region12
    $region11: #{tpu_custom_call.1} parent=5 // pred_region
      %s140 = ssub.s32 %s11, 1
      // Predicated region
      $region13: #{tpu_custom_call.1} parent=11 // pred_check
        %p141 = pneg %p32
      $region14: #{tpu_custom_call.1} parent=11 // pred_check_branch
        %143 = sbr.rel (%p141) target = $region16
      $region15: #{tpu_custom_call.1} parent=11 // pred_region
        _
      $region16: #{tpu_custom_call.1} parent=11 // pred_fallthru
        _
      // Predicated region
      $region17: #{tpu_custom_call.1} parent=11 // pred_check
        %p144 = pneg %p79
      $region18: #{tpu_custom_call.1} parent=11 // pred_check_branch
        %146 = sbr.rel (%p144) target = $region20
      $region19: #{tpu_custom_call.1} parent=11 // pred_region
        _
      $region20: #{tpu_custom_call.1} parent=11 // pred_fallthru
        _
      // Predicated region
      $region21: #{tpu_custom_call.1} parent=11 // pred_check
        %p147 = pneg %p100
      $region22: #{tpu_custom_call.1} parent=11 // pred_check_branch
        %149 = sbr.rel (%p147) target = $region24
      $region23: #{tpu_custom_call.1} parent=11 // pred_region
        _
      $region24: #{tpu_custom_call.1} parent=11 // pred_fallthru
        _
    $region12: #{tpu_custom_call.1} parent=5 // pred_fallthru
      _
    %p150 = scmp.lt.s32.totalorder %s11, 2
    // Predicated region
    $region25: #{tpu_custom_call.1} parent=5 // pred_check
      %p151 = pneg %p150
    $region26: #{tpu_custom_call.1} parent=5 // pred_check_branch
      %153 = sbr.rel (%p151) target = $region28
    $region27: #{tpu_custom_call.1} parent=5 // pred_region
      // Predicated region
      $region29: #{tpu_custom_call.1} parent=27 // pred_check
        %p154 = pneg %p52
      $region30: #{tpu_custom_call.1} parent=27 // pred_check_branch
        %156 = sbr.rel (%p154) target = $region32
      $region31: #{tpu_custom_call.1} parent=27 // pred_region
        %s157 = smul.u32 20, %s11
        %p158 = scmp.lt.s32.totalorder %s157, 39
        %s159 = scalar_select %p158, %s157, 39
        %s160 = smul.addr %s159, 4
        %s161 = scalar_lea.vmem %s1, %s160
        %s162 = smul.u32 20, %s11
      $region32: #{tpu_custom_call.1} parent=27 // pred_fallthru
        _
    $region28: #{tpu_custom_call.1} parent=5 // pred_fallthru
      _
    %p163 = scmp.le.s32.totalorder 1, %s11
    %p164 = scmp.lt.s32.totalorder %s11, 3
    %p165 = pnand %p163, %p164
    %p166 = pneg %p165
    // Predicated region
    $region33: #{tpu_custom_call.1} parent=5 // pred_check
      _
    $region34: #{tpu_custom_call.1} parent=5 // pred_check_branch
      %168 = sbr.rel (%p165) target = $region36
    $region35: #{tpu_custom_call.1} parent=5 // pred_region
      %s169 = ssub.s32 %s11, 1
      %p170 = pneg %p32
      %p171 = pneg %p29
      %s172 = smul.u32 20, %s16
      %p173 = scmp.lt.s32.totalorder %s172, 39
      %s174 = scalar_select %p173, %s172, 39
      %s175 = smul.addr %s174, 4
      %s176 = scalar_lea.vmem %s1, %s175
      %p177 = pneg %p58
      %p178 = pneg %p55
      %p179 = pneg %p79
      %p180 = pneg %p76
      %p181 = pneg %p100
      %p182 = pneg %p97
      %p183 = pneg %p126
      %p184 = pneg %p123
      %p185 = scmp.lt.s32.totalorder %s16, 1
      %s186 = scalar_select %p185, %s16, 1
      %s187 = scalar_lea.vmem %s4, %s186
      %s188 = smul.u32 20, %s16
      %p189 = scmp.lt.s32.totalorder %s188, 39
      %s190 = scalar_select %p189, %s188, 39
      %s191 = smul.addr %s190, 4
      %s192 = scalar_lea.vmem %s1, %s191
      %s193 = smul.u32 20, %s16
      %p194 = scmp.lt.s32.totalorder %s16, 1
      %s195 = scalar_select %p194, %s16, 1
      %s196 = scalar_lea.vmem %s4, %s195
      %v198 = vld [vmem:[%s2] sm:$0xf]
      %v199 = vld [vmem:[%s2 + $0x4] sm:$0xf]
      %v200 = vld [vmem:[%s2 + $0x8] sm:$0xf]
      %v201 = vld [vmem:[%s2 + $0xc] sm:$0xf]
      %v202 = vld [vmem:[%s2 + $0x10] sm:$0xf]
      %v203 = vld [vmem:[%s2 + $0x14] sm:$0xf]
      %v204 = vld [vmem:[%s2 + $0x18] sm:$0xf]
      %v205 = vld [vmem:[%s2 + $0x1c] sm:$0xf]
      %v206 = vld [vmem:[%s2 + $0x20] sm:$0xf]
      %v207 = vld [vmem:[%s2 + $0x24] sm:$0xf]
      %v208 = vld [vmem:[%s2 + $0x28] sm:$0xf]
      %v209 = vld [vmem:[%s2 + $0x2c] sm:$0xf]
      %v210 = vld [vmem:[%s2 + $0x30] sm:$0xf]
      %v211 = vld [vmem:[%s2 + $0x34] sm:$0xf]
      %v212 = vld [vmem:[%s2 + $0x38] sm:$0xf]
      %v213 = vld [vmem:[%s2 + $0x3c] sm:$0xf]
      %v214 = vld [vmem:[%s2 + $0x40] sm:$0xf]
      %v215 = vld [vmem:[%s2 + $0x44] sm:$0xf]
      %v216 = vld [vmem:[%s2 + $0x48] sm:$0xf]
      %v217 = vld [vmem:[%s2 + $0x4c] sm:$0xf]
      %v218 = vld [vmem:[%s2 + $0x50] sm:$0xf]
      %v219 = vld [vmem:[%s2 + $0x54] sm:$0xf]
      %v220 = vld [vmem:[%s2 + $0x58] sm:$0xf]
      %v221 = vld [vmem:[%s2 + $0x5c] sm:$0xf]
      %v222 = vld [vmem:[%s2 + $0x60] sm:$0xf]
      %v223 = vld [vmem:[%s2 + $0x64] sm:$0xf]
      %v224 = vld [vmem:[%s2 + $0x68] sm:$0xf]
      %v225 = vld [vmem:[%s2 + $0x6c] sm:$0xf]
      %v226 = vld [vmem:[%s2 + $0x70] sm:$0xf]
      %v227 = vld [vmem:[%s2 + $0x74] sm:$0xf]
      %v228 = vld [vmem:[%s2 + $0x78] sm:$0xf]
      %v229 = vld [vmem:[%s2 + $0x7c] sm:$0xf]
      %v230 = vld [vmem:[%s2 + $0x80] sm:$0xf]
      %v231 = vld [vmem:[%s2 + $0x84] sm:$0xf]
      %v232 = vld [vmem:[%s2 + $0x88] sm:$0xf]
      %v233 = vld [vmem:[%s2 + $0x8c] sm:$0xf]
      %v234 = vld [vmem:[%s2 + $0x90] sm:$0xf]
      %v235 = vld [vmem:[%s2 + $0x94] sm:$0xf]
      %v236 = vld [vmem:[%s2 + $0x98] sm:$0xf]
      %v237 = vld [vmem:[%s2 + $0x9c] sm:$0xf]
      %v238 = vld [vmem:[%s2 + $0xa0] sm:$0xf]
      %v239 = vld [vmem:[%s2 + $0xa4] sm:$0xf]
      %v240 = vld [vmem:[%s2 + $0xa8] sm:$0xf]
      %v241 = vld [vmem:[%s2 + $0xac] sm:$0xf]
      %v242 = vld [vmem:[%s2 + $0xb0] sm:$0xf]
      %v243 = vld [vmem:[%s2 + $0xb4] sm:$0xf]
      %v244 = vld [vmem:[%s2 + $0xb8] sm:$0xf]
      %v245 = vld [vmem:[%s2 + $0xbc] sm:$0xf]
      %v246 = vld [vmem:[%s2 + $0xc0] sm:$0xf]
      %v247 = vld [vmem:[%s2 + $0xc4] sm:$0xf]
      %v248 = vld [vmem:[%s2 + $0xc8] sm:$0xf]
      %v249 = vld [vmem:[%s2 + $0xcc] sm:$0xf]
      %v250 = vld [vmem:[%s2 + $0xd0] sm:$0xf]
      %v251 = vld [vmem:[%s2 + $0xd4] sm:$0xf]
      %v252 = vld [vmem:[%s2 + $0xd8] sm:$0xf]
      %v253 = vld [vmem:[%s2 + $0xdc] sm:$0xf]
      %v254 = vld [vmem:[%s2 + $0xe0] sm:$0xf]
      %v255 = vld [vmem:[%s2 + $0xe4] sm:$0xf]
      %v256 = vld [vmem:[%s2 + $0xe8] sm:$0xf]
      %v257 = vld [vmem:[%s2 + $0xec] sm:$0xf]
      %v258 = vld [vmem:[%s2 + $0xf0] sm:$0xf]
      %v259 = vld [vmem:[%s2 + $0xf4] sm:$0xf]
      %v260 = vld [vmem:[%s2 + $0xf8] sm:$0xf]
      %v261 = vld [vmem:[%s2 + $0xfc] sm:$0xf]
      %v262 = vld [vmem:[%s2 + $0x100] sm:$0xf]
      %v263 = vld [vmem:[%s2 + $0x104] sm:$0xf]
      %v264 = vld [vmem:[%s2 + $0x108] sm:$0xf]
      %v265 = vld [vmem:[%s2 + $0x10c] sm:$0xf]
      %v266 = vld [vmem:[%s2 + $0x110] sm:$0x1]
      %v267 = vunpack.c.l.bf16 %v266
      %v268 = vld [vmem:[%s2 + $0x110] sm:$0x2]
      %v269 = vunpack.c.l.bf16 %v268
      %v270 = vld [vmem:[%s2 + $0x118] sm:$0xf]
      %v271 = vld [vmem:[%s2 + $0x11c] sm:$0xf]
      %v272 = vld [vmem:[%s2 + $0x120] sm:$0xf]
      %v273 = vld [vmem:[%s2 + $0x124] sm:$0xf]
      %v274 = vld [vmem:[%s2 + $0x128] sm:$0xf]
      %v275 = vld [vmem:[%s2 + $0x12c] sm:$0xf]
      %v276 = vld [vmem:[%s2 + $0x130] sm:$0xf]
      %v277 = vld [vmem:[%s2 + $0x134] sm:$0xf]
      %v278 = vld [vmem:[%s2 + $0x138] sm:$0xf]
      %v279 = vld [vmem:[%s2 + $0x13c] sm:$0xf]
      %v280 = vld [vmem:[%s2 + $0x140] sm:$0xf]
      %v281 = vld [vmem:[%s2 + $0x144] sm:$0xf]
      %v282 = vld [vmem:[%s2 + $0x148] sm:$0xf]
      %v283 = vld [vmem:[%s2 + $0x14c] sm:$0xf]
      %v284 = vld [vmem:[%s2 + $0x150] sm:$0xf]
      %v285 = vld [vmem:[%s2 + $0x154] sm:$0xf]
      %v286 = vld [vmem:[%s192] sm:$0xf]
      %v287 = vld [vmem:[%s192 + $0x4] sm:$0xf]
      %v288 = vld [vmem:[%s192 + $0x8] sm:$0xf]
      %v289 = vld [vmem:[%s192 + $0xc] sm:$0xf]
      %v290 = vld [vmem:[%s192 + $0x10] sm:$0xf]
      %v291 = vld [vmem:[%s192 + $0x14] sm:$0xf]
      %v292 = vld [vmem:[%s192 + $0x18] sm:$0xf]
      %v293 = vld [vmem:[%s192 + $0x1c] sm:$0xf]
      %v294 = vld [vmem:[%s192 + $0x20] sm:$0xf]
      %v295 = vld [vmem:[%s192 + $0x24] sm:$0xf]
      %v296 = vld [vmem:[%s192 + $0x28] sm:$0xf]
      %v297 = vld [vmem:[%s192 + $0x2c] sm:$0xf]
      %v298 = vld [vmem:[%s192 + $0x30] sm:$0xf]
      %v299 = vld [vmem:[%s192 + $0x34] sm:$0xf]
      %v300 = vld [vmem:[%s192 + $0x38] sm:$0xf]
      %v301 = vld [vmem:[%s192 + $0x3c] sm:$0xf]
      %v302 = vld [vmem:[%s192 + $0x40] sm:$0xf]
      %v303 = vld [vmem:[%s192 + $0x44] sm:$0xf]
      %v304 = vld [vmem:[%s192 + $0x48] sm:$0xf]
      %v305 = vld [vmem:[%s192 + $0x4c] sm:$0xf]
      %v325 = vunpack.c.l.b16 %v286
      %v326 = vunpack.c.l.b16 %v287
      %v327 = vunpack.c.l.b16 %v288
      %v328 = vunpack.c.l.b16 %v289
      %v329 = vunpack.c.l.b16 %v290
      %v330 = vunpack.c.l.b16 %v291
      %v331 = vunpack.c.l.b16 %v292
      %v332 = vunpack.c.l.b16 %v293
      %v333 = vunpack.c.l.b16 %v294
      %v334 = vunpack.c.l.b16 %v295
      %v335 = vunpack.c.l.b16 %v296
      %v336 = vunpack.c.l.b16 %v297
      %v337 = vunpack.c.l.b16 %v298
      %v338 = vunpack.c.l.b16 %v299
      %v339 = vunpack.c.l.b16 %v300
      %v340 = vunpack.c.l.b16 %v301
      %v341 = vunpack.c.l.b16 %v302
      %v342 = vunpack.c.l.b16 %v303
      %v343 = vunpack.c.l.b16 %v304
      %v344 = vpack.c.b16 %v326, %v325
      %v345 = vpack.c.b16 %v328, %v327
      %v346 = vpack.c.b16 %v330, %v329
      %v347 = vpack.c.b16 %v332, %v331
      %v348 = vpack.c.b16 %v334, %v333
      %v349 = vpack.c.b16 %v336, %v335
      %v350 = vpack.c.b16 %v338, %v337
      %v351 = vpack.c.b16 %v340, %v339
      %v352 = vpack.c.b16 %v342, %v341
      %v353 = vpack.c.b16 %v343, %v343
      %vm354 = vsmask.f32 7424
      %v356 = vshrl.u32 %v344, 16
      %v358 = vshll.u32 %v344, 16
      %v360 = vrot.slane %v358, 1
      %v361 = vor.u32 %v356, %v360
      %v363 = vshll.u32 %v345, 16
      %v365 = vrot.slane %v363, 1
      %v366 = vsel %vm354, %v361, %v365
      %v367 = vshrl.u32 %v345, 16
      %v369 = vor.u32 %v367, %v365
      %v371 = vshll.u32 %v346, 16
      %v373 = vrot.slane %v371, 1
      %v374 = vsel %vm354, %v369, %v373
      %v375 = vshrl.u32 %v346, 16
      %v377 = vor.u32 %v375, %v373
      %v379 = vshll.u32 %v347, 16
      %v381 = vrot.slane %v379, 1
      %v382 = vsel %vm354, %v377, %v381
      %v383 = vshrl.u32 %v347, 16
      %v385 = vor.u32 %v383, %v381
      %v387 = vshll.u32 %v348, 16
      %v389 = vrot.slane %v387, 1
      %v390 = vsel %vm354, %v385, %v389
      %v391 = vshrl.u32 %v348, 16
      %v393 = vor.u32 %v391, %v389
      %v395 = vshll.u32 %v349, 16
      %v397 = vrot.slane %v395, 1
      %v398 = vsel %vm354, %v393, %v397
      %v399 = vshrl.u32 %v349, 16
      %v401 = vor.u32 %v399, %v397
      %v403 = vshll.u32 %v350, 16
      %v405 = vrot.slane %v403, 1
      %v406 = vsel %vm354, %v401, %v405
      %v407 = vshrl.u32 %v350, 16
      %v409 = vor.u32 %v407, %v405
      %v411 = vshll.u32 %v351, 16
      %v413 = vrot.slane %v411, 1
      %v414 = vsel %vm354, %v409, %v413
      %v415 = vshrl.u32 %v351, 16
      %v417 = vor.u32 %v415, %v413
      %v419 = vshll.u32 %v352, 16
      %v421 = vrot.slane %v419, 1
      %v422 = vsel %vm354, %v417, %v421
      %v423 = vshrl.u32 %v352, 16
      %v425 = vor.u32 %v423, %v421
      %v427 = vshll.u32 %v353, 16
      %v429 = vrot.slane %v427, 1
      %v430 = vsel %vm354, %v425, %v429
      %v431 = vshrl.u32 %v353, 16
      %v433 = vor.u32 %v431, %v429
      %434 = vrot.lane.b32.xlu0 %v366, 8
      %v435 = vpop.permute.xlu0 %434
      %436 = vrot.lane.b32.xlu0 %v374, 8
      %v437 = vpop.permute.xlu0 %436
      %438 = vrot.lane.b32.xlu0 %v382, 8
      %v439 = vpop.permute.xlu0 %438
      %440 = vrot.lane.b32.xlu0 %v390, 8
      %v441 = vpop.permute.xlu0 %440
      %442 = vrot.lane.b32.xlu0 %v398, 8
      %v443 = vpop.permute.xlu0 %442
      %444 = vrot.lane.b32.xlu0 %v406, 8
      %v445 = vpop.permute.xlu0 %444
      %446 = vrot.lane.b32.xlu0 %v414, 8
      %v447 = vpop.permute.xlu0 %446
      %448 = vrot.lane.b32.xlu0 %v422, 8
      %v449 = vpop.permute.xlu0 %448
      %450 = vrot.lane.b32.xlu0 %v430, 8
      %v451 = vpop.permute.xlu0 %450
      %452 = vrot.lane.b32.xlu0 %v433, 8
      %v453 = vpop.permute.xlu0 %452
      %v455 = vunpack.c.l.b16 %v305
      %v456 = vpack.c.b16 %v327, %v326
      %v457 = vpack.c.b16 %v329, %v328
      %v458 = vpack.c.b16 %v331, %v330
      %v459 = vpack.c.b16 %v333, %v332
      %v460 = vpack.c.b16 %v335, %v334
      %v461 = vpack.c.b16 %v337, %v336
      %v462 = vpack.c.b16 %v339, %v338
      %v463 = vpack.c.b16 %v341, %v340
      %v464 = vpack.c.b16 %v343, %v342
      %v465 = vpack.c.b16 %v455, %v455
      %466 = vrot.lane.b32.xlu0 %v456, 16
      %v467 = vpop.permute.xlu0 %466
      %468 = vrot.lane.b32.xlu0 %v457, 16
      %v469 = vpop.permute.xlu0 %468
      %470 = vrot.lane.b32.xlu0 %v458, 16
      %v471 = vpop.permute.xlu0 %470
      %472 = vrot.lane.b32.xlu0 %v459, 16
      %v473 = vpop.permute.xlu0 %472
      %474 = vrot.lane.b32.xlu0 %v460, 16
      %v475 = vpop.permute.xlu0 %474
      %476 = vrot.lane.b32.xlu0 %v461, 16
      %v477 = vpop.permute.xlu0 %476
      %478 = vrot.lane.b32.xlu0 %v462, 16
      %v479 = vpop.permute.xlu0 %478
      %480 = vrot.lane.b32.xlu0 %v463, 16
      %v481 = vpop.permute.xlu0 %480
      %482 = vrot.lane.b32.xlu0 %v464, 16
      %v483 = vpop.permute.xlu0 %482
      %484 = vrot.lane.b32.xlu0 %v465, 16
      %v485 = vpop.permute.xlu0 %484
      %v487 = vshrl.u32 %v456, 16
      %v489 = vshll.u32 %v456, 16
      %v491 = vrot.slane %v489, 1
      %v492 = vor.u32 %v487, %v491
      %v494 = vshll.u32 %v457, 16
      %v496 = vrot.slane %v494, 1
      %v497 = vsel %vm354, %v492, %v496
      %v498 = vshrl.u32 %v457, 16
      %v500 = vor.u32 %v498, %v496
      %v502 = vshll.u32 %v458, 16
      %v504 = vrot.slane %v502, 1
      %v505 = vsel %vm354, %v500, %v504
      %v506 = vshrl.u32 %v458, 16
      %v508 = vor.u32 %v506, %v504
      %v510 = vshll.u32 %v459, 16
      %v512 = vrot.slane %v510, 1
      %v513 = vsel %vm354, %v508, %v512
      %v514 = vshrl.u32 %v459, 16
      %v516 = vor.u32 %v514, %v512
      %v518 = vshll.u32 %v460, 16
      %v520 = vrot.slane %v518, 1
      %v521 = vsel %vm354, %v516, %v520
      %v522 = vshrl.u32 %v460, 16
      %v524 = vor.u32 %v522, %v520
      %v526 = vshll.u32 %v461, 16
      %v528 = vrot.slane %v526, 1
      %v529 = vsel %vm354, %v524, %v528
      %v530 = vshrl.u32 %v461, 16
      %v532 = vor.u32 %v530, %v528
      %v534 = vshll.u32 %v462, 16
      %v536 = vrot.slane %v534, 1
      %v537 = vsel %vm354, %v532, %v536
      %v538 = vshrl.u32 %v462, 16
      %v540 = vor.u32 %v538, %v536
      %v542 = vshll.u32 %v463, 16
      %v544 = vrot.slane %v542, 1
      %v545 = vsel %vm354, %v540, %v544
      %v546 = vshrl.u32 %v463, 16
      %v548 = vor.u32 %v546, %v544
      %v550 = vshll.u32 %v464, 16
      %v552 = vrot.slane %v550, 1
      %v553 = vsel %vm354, %v548, %v552
      %v554 = vshrl.u32 %v464, 16
      %v556 = vor.u32 %v554, %v552
      %v558 = vshll.u32 %v465, 16
      %v560 = vrot.slane %v558, 1
      %v561 = vsel %vm354, %v556, %v560
      %v562 = vshrl.u32 %v465, 16
      %v564 = vor.u32 %v562, %v560
      %565 = vrot.lane.b32.xlu0 %v497, 24
      %v566 = vpop.permute.xlu0 %565
      %567 = vrot.lane.b32.xlu0 %v505, 24
      %v568 = vpop.permute.xlu0 %567
      %569 = vrot.lane.b32.xlu0 %v513, 24
      %v570 = vpop.permute.xlu0 %569
      %571 = vrot.lane.b32.xlu0 %v521, 24
      %v572 = vpop.permute.xlu0 %571
      %573 = vrot.lane.b32.xlu0 %v529, 24
      %v574 = vpop.permute.xlu0 %573
      %575 = vrot.lane.b32.xlu0 %v537, 24
      %v576 = vpop.permute.xlu0 %575
      %577 = vrot.lane.b32.xlu0 %v545, 24
      %v578 = vpop.permute.xlu0 %577
      %579 = vrot.lane.b32.xlu0 %v553, 24
      %v580 = vpop.permute.xlu0 %579
      %581 = vrot.lane.b32.xlu0 %v561, 24
      %v582 = vpop.permute.xlu0 %581
      %583 = vrot.lane.b32.xlu0 %v564, 24
      %v584 = vpop.permute.xlu0 %583
      %vm585 = vcmask 64512
      %v587 = vsel %vm585, %v344, %v435
      %v589 = vsel %vm585, %v345, %v437
      %v591 = vsel %vm585, %v346, %v439
      %v593 = vsel %vm585, %v347, %v441
      %v595 = vsel %vm585, %v348, %v443
      %v597 = vsel %vm585, %v349, %v445
      %v599 = vsel %vm585, %v350, %v447
      %v601 = vsel %vm585, %v351, %v449
      %v603 = vsel %vm585, %v352, %v451
      %v605 = vsel %vm585, %v353, %v453
      %vm606 = vcmask 130048
      %v608 = vsel %vm606, %v587, %v467
      %v610 = vsel %vm606, %v589, %v469
      %v612 = vsel %vm606, %v591, %v471
      %v614 = vsel %vm606, %v593, %v473
      %v616 = vsel %vm606, %v595, %v475
      %v618 = vsel %vm606, %v597, %v477
      %v620 = vsel %vm606, %v599, %v479
      %v622 = vsel %vm606, %v601, %v481
      %v624 = vsel %vm606, %v603, %v483
      %v626 = vsel %vm606, %v605, %v485
      %vm627 = vcmask 195584
      %v629 = vsel %vm627, %v608, %v566
      %v631 = vsel %vm627, %v610, %v568
      %v633 = vsel %vm627, %v612, %v570
      %v635 = vsel %vm627, %v614, %v572
      %v637 = vsel %vm627, %v616, %v574
      %v639 = vsel %vm627, %v618, %v576
      %v641 = vsel %vm627, %v620, %v578
      %v643 = vsel %vm627, %v622, %v580
      %v645 = vsel %vm627, %v624, %v582
      %v647 = vsel %vm627, %v626, %v584
      %v648 = vlaneseq
      %v649 = vshrl.u32 %v648, 7
      %v650 = vsub.s32 0, %v649
      %v651 = vrot.slane %v267, %v650
      %v656 = vunpack.c.l.b16 %v198
      %v657 = vunpack.c.l.b16 %v199
      %v658 = vunpack.c.l.b16 %v200
      %v659 = vunpack.c.l.b16 %v201
      %v660 = vpack.c.b16 %v657, %v656
      %v661 = vpack.c.b16 %v659, %v658
      %vm664 = vcmask 261120
      %v665 = vsel %vm664, %v629, 0
      %v667 = vsel %vm664, %v631, 0
      %v669 = vsel %vm664, %v633, 0
      %v671 = vsel %vm664, %v635, 0
      %v673 = vsel %vm664, %v637, 0
      %v675 = vsel %vm664, %v639, 0
      %v677 = vsel %vm664, %v641, 0
      %v679 = vsel %vm664, %v643, 0
      %v681 = vsel %vm664, %v645, 0
      %v683 = vsel %vm664, %v647, 0
      %685 = vmatprep.subr.bf16.mxu0 0
      %686 = vmatpush1.bf16.msra.mxu0 0
      %687 = vmatprep.subr.bf16.mxu0 0
      %688 = vmatpush1.bf16.msra.mxu0 0
      %689 = vmatprep.subr.bf16.mxu0 0
      %690 = vmatpush1.bf16.msra.mxu0 0
      %691 = vmatprep.subr.bf16.mxu0 0
      %692 = vmatpush1.bf16.msra.mxu0 0
      %693 = vmatprep.subr.bf16.mxu0 0
      %694 = vmatpush1.bf16.msra.mxu0 0
      %695 = vmatprep.subr.bf16.mxu0 0
      %696 = vmatpush1.bf16.msra.mxu0 0
      %697 = vmatprep.subr.bf16.mxu0 0
      %698 = vmatpush1.bf16.msra.mxu0 %v661
      %699 = vmatprep.subr.bf16.mxu0 0
      %700 = vmatpush1.bf16.msra.mxu0 %v660
      %701 = vmatprep.subr.bf16.mxu0 0
      %702 = vmatpush2.bf16.msra.mxu0 0
      %703 = vmatprep.subr.bf16.mxu0 0
      %704 = vmatpush2.bf16.msra.mxu0 0
      %705 = vmatprep.subr.bf16.mxu0 0
      %706 = vmatpush2.bf16.msra.mxu0 0
      %707 = vmatprep.subr.bf16.mxu0 0
      %708 = vmatpush2.bf16.msra.mxu0 0
      %709 = vmatprep.subr.bf16.mxu0 0
      %710 = vmatpush2.bf16.msra.mxu0 0
      %711 = vmatprep.subr.bf16.mxu0 0
      %712 = vmatpush2.bf16.msra.mxu0 0
      %713 = vmatprep.subr.bf16.mxu0 0
      %714 = vmatpush2.bf16.msra.mxu0 0
      %715 = vmatprep.subr.bf16.mxu0 0
      %716 = vmatpush2.bf16.msra.mxu0 0
      %717 = vmatprep.mubr.bf16.mxu0 0
      %718 = vmatmul.mubr.bf16.gmra.mxu0 %v665
      %v719 = vpop.f32.mrf.mxu0
      %v720 = vadd.f32 %v651, %v719
      %v721 = vpop.f32.mrf.mxu0
      %v722 = vpop.f32.mrf.mxu0
      %v723 = vadd.f32 %v651, %v722
      %v724 = vpop.f32.mrf.mxu0
      %725 = vmatprep.mubr.bf16.mxu0 0
      %726 = vmatmul.mubr.bf16.gmra.mxu0 %v667
      %v727 = vpop.f32.mrf.mxu0
      %v728 = vadd.f32 %v651, %v727
      %v729 = vpop.f32.mrf.mxu0
      %v730 = vpop.f32.mrf.mxu0
      %v731 = vadd.f32 %v651, %v730
      %v732 = vpop.f32.mrf.mxu0
      %733 = vmatprep.mubr.bf16.mxu0 0
      %734 = vmatmul.mubr.bf16.gmra.mxu0 %v669
      %v735 = vpop.f32.mrf.mxu0
      %v736 = vadd.f32 %v651, %v735
      %v737 = vpop.f32.mrf.mxu0
      %v738 = vpop.f32.mrf.mxu0
      %v739 = vadd.f32 %v651, %v738
      %v740 = vpop.f32.mrf.mxu0
      %741 = vmatprep.mubr.bf16.mxu0 0
      %742 = vmatmul.mubr.bf16.gmra.mxu0 %v671
      %v743 = vpop.f32.mrf.mxu0
      %v744 = vadd.f32 %v651, %v743
      %v745 = vpop.f32.mrf.mxu0
      %v746 = vpop.f32.mrf.mxu0
      %v747 = vadd.f32 %v651, %v746
      %v748 = vpop.f32.mrf.mxu0
      %749 = vmatprep.mubr.bf16.mxu0 0
      %750 = vmatmul.mubr.bf16.gmra.mxu0 %v673
      %v751 = vpop.f32.mrf.mxu0
      %v752 = vadd.f32 %v651, %v751
      %v753 = vpop.f32.mrf.mxu0
      %v754 = vpop.f32.mrf.mxu0
      %v755 = vadd.f32 %v651, %v754
      %v756 = vpop.f32.mrf.mxu0
      %757 = vmatprep.mubr.bf16.mxu0 0
      %758 = vmatmul.mubr.bf16.gmra.mxu0 %v675
      %v759 = vpop.f32.mrf.mxu0
      %v760 = vadd.f32 %v651, %v759
      %v761 = vpop.f32.mrf.mxu0
      %v762 = vpop.f32.mrf.mxu0
      %v763 = vadd.f32 %v651, %v762
      %v764 = vpop.f32.mrf.mxu0
      %765 = vmatprep.mubr.bf16.mxu0 0
      %766 = vmatmul.mubr.bf16.gmra.mxu0 %v677
      %v767 = vpop.f32.mrf.mxu0
      %v768 = vadd.f32 %v651, %v767
      %v769 = vpop.f32.mrf.mxu0
      %v770 = vpop.f32.mrf.mxu0
      %v771 = vadd.f32 %v651, %v770
      %v772 = vpop.f32.mrf.mxu0
      %773 = vmatprep.mubr.bf16.mxu0 0
      %774 = vmatmul.mubr.bf16.gmra.mxu0 %v679
      %v775 = vpop.f32.mrf.mxu0
      %v776 = vadd.f32 %v651, %v775
      %v777 = vpop.f32.mrf.mxu0
      %v778 = vpop.f32.mrf.mxu0
      %v779 = vadd.f32 %v651, %v778
      %v780 = vpop.f32.mrf.mxu0
      %781 = vmatprep.mubr.bf16.mxu0 0
      %782 = vmatmul.mubr.bf16.gmra.mxu0 %v681
      %v783 = vpop.f32.mrf.mxu0
      %v784 = vadd.f32 %v651, %v783
      %v785 = vpop.f32.mrf.mxu0
      %v786 = vpop.f32.mrf.mxu0
      %v787 = vadd.f32 %v651, %v786
      %v788 = vpop.f32.mrf.mxu0
      %789 = vmatprep.mubr.bf16.mxu0 0
      %790 = vmatmul.mubr.bf16.gmra.mxu0 %v683
      %v791 = vpop.f32.mrf.mxu0
      %v792 = vadd.f32 %v651, %v791
      %v793 = vpop.f32.mrf.mxu0
      %v794 = vpop.f32.mrf.mxu0
      %v795 = vpop.f32.mrf.mxu0
      %796 = vdwg.mxu0
      %v797 = vmul.f32 %v720, 0.01
      %v798 = vmul.f32 %v723, 0.01
      %v799 = vmul.f32 %v728, 0.01
      %v800 = vmul.f32 %v731, 0.01
      %v801 = vmul.f32 %v736, 0.01
      %v802 = vmul.f32 %v739, 0.01
      %v803 = vmul.f32 %v744, 0.01
      %v804 = vmul.f32 %v747, 0.01
      %v805 = vmul.f32 %v752, 0.01
      %v806 = vmul.f32 %v755, 0.01
      %v807 = vmul.f32 %v760, 0.01
      %v808 = vmul.f32 %v763, 0.01
      %v809 = vmul.f32 %v768, 0.01
      %v810 = vmul.f32 %v771, 0.01
      %v811 = vmul.f32 %v776, 0.01
      %v812 = vmul.f32 %v779, 0.01
      %v813 = vmul.f32 %v784, 0.01
      %v814 = vmul.f32 %v787, 0.01
      %v815 = vmul.f32 %v792, 0.01
      %v816 = vmax.f32 %v720, %v797
      %v817 = vmax.f32 %v723, %v798
      %v818 = vmax.f32 %v728, %v799
      %v819 = vmax.f32 %v731, %v800
      %v820 = vmax.f32 %v736, %v801
      %v821 = vmax.f32 %v739, %v802
      %v822 = vmax.f32 %v744, %v803
      %v823 = vmax.f32 %v747, %v804
      %v824 = vmax.f32 %v752, %v805
      %v825 = vmax.f32 %v755, %v806
      %v826 = vmax.f32 %v760, %v807
      %v827 = vmax.f32 %v763, %v808
      %v828 = vmax.f32 %v768, %v809
      %v829 = vmax.f32 %v771, %v810
      %v830 = vmax.f32 %v776, %v811
      %v831 = vmax.f32 %v779, %v812
      %v832 = vmax.f32 %v784, %v813
      %v833 = vmax.f32 %v787, %v814
      %v834 = vmax.f32 %v792, %v815
      %v835 = vpack.c.bf16 %v817, %v816
      %v836 = vpack.c.bf16 %v819, %v818
      %v837 = vpack.c.bf16 %v821, %v820
      %v838 = vpack.c.bf16 %v823, %v822
      %v839 = vpack.c.bf16 %v825, %v824
      %v840 = vpack.c.bf16 %v827, %v826
      %v841 = vpack.c.bf16 %v829, %v828
      %v842 = vpack.c.bf16 %v831, %v830
      %v843 = vpack.c.bf16 %v833, %v832
      %v844 = vpack.c.bf16 %v834, %v834
      %v846 = vshrl.u32 %v835, 16
      %v848 = vshll.u32 %v835, 16
      %v850 = vrot.slane %v848, 1
      %v851 = vor.u32 %v846, %v850
      %v853 = vshll.u32 %v836, 16
      %v855 = vrot.slane %v853, 1
      %v856 = vsel %vm354, %v851, %v855
      %v857 = vshrl.u32 %v836, 16
      %v859 = vor.u32 %v857, %v855
      %v861 = vshll.u32 %v837, 16
      %v863 = vrot.slane %v861, 1
      %v864 = vsel %vm354, %v859, %v863
      %v865 = vshrl.u32 %v837, 16
      %v867 = vor.u32 %v865, %v863
      %v869 = vshll.u32 %v838, 16
      %v871 = vrot.slane %v869, 1
      %v872 = vsel %vm354, %v867, %v871
      %v873 = vshrl.u32 %v838, 16
      %v875 = vor.u32 %v873, %v871
      %v877 = vshll.u32 %v839, 16
      %v879 = vrot.slane %v877, 1
      %v880 = vsel %vm354, %v875, %v879
      %v881 = vshrl.u32 %v839, 16
      %v883 = vor.u32 %v881, %v879
      %v885 = vshll.u32 %v840, 16
      %v887 = vrot.slane %v885, 1
      %v888 = vsel %vm354, %v883, %v887
      %v889 = vshrl.u32 %v840, 16
      %v891 = vor.u32 %v889, %v887
      %v893 = vshll.u32 %v841, 16
      %v895 = vrot.slane %v893, 1
      %v896 = vsel %vm354, %v891, %v895
      %v897 = vshrl.u32 %v841, 16
      %v899 = vor.u32 %v897, %v895
      %v901 = vshll.u32 %v842, 16
      %v903 = vrot.slane %v901, 1
      %v904 = vsel %vm354, %v899, %v903
      %v905 = vshrl.u32 %v842, 16
      %v907 = vor.u32 %v905, %v903
      %v909 = vshll.u32 %v843, 16
      %v911 = vrot.slane %v909, 1
      %v912 = vsel %vm354, %v907, %v911
      %v913 = vshrl.u32 %v843, 16
      %v915 = vor.u32 %v913, %v911
      %916 = vrot.lane.b32.xlu0 %v856, 64
      %v917 = vpop.permute.xlu0 %916
      %918 = vrot.lane.b32.xlu0 %v864, 64
      %v919 = vpop.permute.xlu0 %918
      %920 = vrot.lane.b32.xlu0 %v872, 64
      %v921 = vpop.permute.xlu0 %920
      %922 = vrot.lane.b32.xlu0 %v880, 64
      %v923 = vpop.permute.xlu0 %922
      %924 = vrot.lane.b32.xlu0 %v888, 64
      %v925 = vpop.permute.xlu0 %924
      %926 = vrot.lane.b32.xlu0 %v896, 64
      %v927 = vpop.permute.xlu0 %926
      %928 = vrot.lane.b32.xlu0 %v904, 64
      %v929 = vpop.permute.xlu0 %928
      %930 = vrot.lane.b32.xlu0 %v912, 64
      %v931 = vpop.permute.xlu0 %930
      %932 = vrot.lane.b32.xlu0 %v915, 64
      %v933 = vpop.permute.xlu0 %932
      %vm944 = vcmask 1043456
      %v945 = vrot.slane %v835, 4
      %v946 = vrot.slane %v836, 4
      %v947 = vsel %vm944, %v945, %v946
      %v948 = vrot.slane %v837, 4
      %v949 = vsel %vm944, %v946, %v948
      %v950 = vrot.slane %v838, 4
      %v951 = vsel %vm944, %v948, %v950
      %v952 = vrot.slane %v839, 4
      %v953 = vsel %vm944, %v950, %v952
      %v954 = vrot.slane %v840, 4
      %v955 = vsel %vm944, %v952, %v954
      %v956 = vrot.slane %v841, 4
      %v957 = vsel %vm944, %v954, %v956
      %v958 = vrot.slane %v842, 4
      %v959 = vsel %vm944, %v956, %v958
      %v960 = vrot.slane %v843, 4
      %v961 = vsel %vm944, %v958, %v960
      %v962 = vrot.slane %v844, 4
      %v963 = vsel %vm944, %v960, %v962
      %vm964 = vsmask.f32 3328
      %v965 = vrot.slane %v846, 4
      %v966 = vrot.slane %v848, 5
      %v967 = vor.u32 %v965, %v966
      %v968 = vrot.slane %v857, 4
      %v969 = vrot.slane %v853, 5
      %v970 = vor.u32 %v968, %v969
      %v971 = vsel %vm964, %v967, %v970
      %v972 = vrot.slane %v865, 4
      %v973 = vrot.slane %v861, 5
      %v974 = vor.u32 %v972, %v973
      %v975 = vsel %vm964, %v970, %v974
      %v976 = vrot.slane %v873, 4
      %v977 = vrot.slane %v869, 5
      %v978 = vor.u32 %v976, %v977
      %v979 = vsel %vm964, %v974, %v978
      %v980 = vrot.slane %v881, 4
      %v981 = vrot.slane %v877, 5
      %v982 = vor.u32 %v980, %v981
      %v983 = vsel %vm964, %v978, %v982
      %v984 = vrot.slane %v889, 4
      %v985 = vrot.slane %v885, 5
      %v986 = vor.u32 %v984, %v985
      %v987 = vsel %vm964, %v982, %v986
      %v988 = vrot.slane %v897, 4
      %v989 = vrot.slane %v893, 5
      %v990 = vor.u32 %v988, %v989
      %v991 = vsel %vm964, %v986, %v990
      %v992 = vrot.slane %v905, 4
      %v993 = vrot.slane %v901, 5
      %v994 = vor.u32 %v992, %v993
      %v995 = vsel %vm964, %v990, %v994
      %v996 = vrot.slane %v913, 4
      %v997 = vrot.slane %v909, 5
      %v998 = vor.u32 %v996, %v997
      %v999 = vsel %vm964, %v994, %v998
      %v1001 = vshrl.u32 %v844, 16
      %v1003 = vrot.slane %v1001, 4
      %v1004 = vshll.u32 %v844, 16
      %v1006 = vrot.slane %v1004, 5
      %v1007 = vor.u32 %v1003, %v1006
      %v1008 = vsel %vm964, %v998, %v1007
      %1009 = vrot.lane.b32.xlu0 %v971, 64
      %v1010 = vpop.permute.xlu0 %1009
      %1011 = vrot.lane.b32.xlu0 %v975, 64
      %v1012 = vpop.permute.xlu0 %1011
      %1013 = vrot.lane.b32.xlu0 %v979, 64
      %v1014 = vpop.permute.xlu0 %1013
      %1015 = vrot.lane.b32.xlu0 %v983, 64
      %v1016 = vpop.permute.xlu0 %1015
      %1017 = vrot.lane.b32.xlu0 %v987, 64
      %v1018 = vpop.permute.xlu0 %1017
      %1019 = vrot.lane.b32.xlu0 %v991, 64
      %v1020 = vpop.permute.xlu0 %1019
      %1021 = vrot.lane.b32.xlu0 %v995, 64
      %v1022 = vpop.permute.xlu0 %1021
      %1023 = vrot.lane.b32.xlu0 %v999, 64
      %v1024 = vpop.permute.xlu0 %1023
      %1025 = vrot.lane.b32.xlu0 %v1008, 64
      %v1026 = vpop.permute.xlu0 %1025
      %vm1027 = vcmask 523264
      %v1029 = vsel %vm1027, %v835, %v917
      %v1032 = vsel %vm1027, %v836, %v919
      %v1035 = vsel %vm1027, %v837, %v921
      %v1038 = vsel %vm1027, %v838, %v923
      %v1041 = vsel %vm1027, %v839, %v925
      %v1044 = vsel %vm1027, %v840, %v927
      %v1047 = vsel %vm1027, %v841, %v929
      %v1050 = vsel %vm1027, %v842, %v931
      %v1053 = vsel %vm1027, %v843, %v933
      %v1057 = vsel %vm1027, %v947, %v1010
      %v1061 = vsel %vm1027, %v949, %v1012
      %v1065 = vsel %vm1027, %v951, %v1014
      %v1069 = vsel %vm1027, %v953, %v1016
      %v1073 = vsel %vm1027, %v955, %v1018
      %v1077 = vsel %vm1027, %v957, %v1020
      %v1081 = vsel %vm1027, %v959, %v1022
      %v1085 = vsel %vm1027, %v961, %v1024
      %v1089 = vsel %vm1027, %v963, %v1026
      %v1091 = vlaneseq
      %v1092 = vshrl.u32 %v1091, 7
      %v1093 = vsub.s32 1, %v1092
      %v1094 = vrot.slane %v267, %v1093
      %v1127 = vunpack.c.l.b16 %v202
      %v1128 = vunpack.c.l.b16 %v203
      %v1129 = vunpack.c.l.b16 %v204
      %v1130 = vunpack.c.l.b16 %v205
      %v1131 = vunpack.c.l.b16 %v206
      %v1132 = vunpack.c.l.b16 %v207
      %v1133 = vunpack.c.l.b16 %v208
      %v1134 = vunpack.c.l.b16 %v209
      %v1135 = vunpack.c.l.b16 %v210
      %v1136 = vunpack.c.l.b16 %v211
      %v1137 = vunpack.c.l.b16 %v212
      %v1138 = vunpack.c.l.b16 %v213
      %v1139 = vunpack.c.l.b16 %v214
      %v1140 = vunpack.c.l.b16 %v215
      %v1141 = vunpack.c.l.b16 %v216
      %v1142 = vunpack.c.l.b16 %v217
      %v1143 = vunpack.c.l.b16 %v218
      %v1144 = vunpack.c.l.b16 %v219
      %v1145 = vunpack.c.l.b16 %v220
      %v1146 = vunpack.c.l.b16 %v221
      %v1147 = vunpack.c.l.b16 %v222
      %v1148 = vunpack.c.l.b16 %v223
      %v1149 = vunpack.c.l.b16 %v224
      %v1150 = vunpack.c.l.b16 %v225
      %v1151 = vunpack.c.l.b16 %v226
      %v1152 = vunpack.c.l.b16 %v227
      %v1153 = vunpack.c.l.b16 %v228
      %v1154 = vunpack.c.l.b16 %v229
      %v1155 = vunpack.c.l.b16 %v230
      %v1156 = vunpack.c.l.b16 %v231
      %v1157 = vunpack.c.l.b16 %v232
      %v1158 = vunpack.c.l.b16 %v233
      %v1159 = vpack.c.b16 %v1128, %v1127
      %v1160 = vpack.c.b16 %v1130, %v1129
      %v1161 = vpack.c.b16 %v1132, %v1131
      %v1162 = vpack.c.b16 %v1134, %v1133
      %v1163 = vpack.c.b16 %v1136, %v1135
      %v1164 = vpack.c.b16 %v1138, %v1137
      %v1165 = vpack.c.b16 %v1140, %v1139
      %v1166 = vpack.c.b16 %v1142, %v1141
      %v1167 = vpack.c.b16 %v1144, %v1143
      %v1168 = vpack.c.b16 %v1146, %v1145
      %v1169 = vpack.c.b16 %v1148, %v1147
      %v1170 = vpack.c.b16 %v1150, %v1149
      %v1171 = vpack.c.b16 %v1152, %v1151
      %v1172 = vpack.c.b16 %v1154, %v1153
      %v1173 = vpack.c.b16 %v1156, %v1155
      %v1174 = vpack.c.b16 %v1158, %v1157
      %1191 = vmatprep.subr.bf16.mxu0 0
      %1192 = vmatpush1.bf16.msra.mxu0 %v1166
      %1193 = vmatprep.subr.bf16.mxu0 0
      %1194 = vmatpush1.bf16.msra.mxu0 %v1165
      %1195 = vmatprep.subr.bf16.mxu0 0
      %1196 = vmatpush1.bf16.msra.mxu0 %v1164
      %1197 = vmatprep.subr.bf16.mxu0 0
      %1198 = vmatpush1.bf16.msra.mxu0 %v1163
      %1199 = vmatprep.subr.bf16.mxu0 0
      %1200 = vmatpush1.bf16.msra.mxu0 %v1162
      %1201 = vmatprep.subr.bf16.mxu0 0
      %1202 = vmatpush1.bf16.msra.mxu0 %v1161
      %1203 = vmatprep.subr.bf16.mxu0 0
      %1204 = vmatpush1.bf16.msra.mxu0 %v1160
      %1205 = vmatprep.subr.bf16.mxu0 0
      %1206 = vmatpush1.bf16.msra.mxu0 %v1159
      %1207 = vmatprep.subr.bf16.mxu0 0
      %1208 = vmatpush2.bf16.msra.mxu0 %v1174
      %1209 = vmatprep.subr.bf16.mxu0 0
      %1210 = vmatpush2.bf16.msra.mxu0 %v1173
      %1211 = vmatprep.subr.bf16.mxu0 0
      %1212 = vmatpush2.bf16.msra.mxu0 %v1172
      %1213 = vmatprep.subr.bf16.mxu0 0
      %1214 = vmatpush2.bf16.msra.mxu0 %v1171
      %1215 = vmatprep.subr.bf16.mxu0 0
      %1216 = vmatpush2.bf16.msra.mxu0 %v1170
      %1217 = vmatprep.subr.bf16.mxu0 0
      %1218 = vmatpush2.bf16.msra.mxu0 %v1169
      %1219 = vmatprep.subr.bf16.mxu0 0
      %1220 = vmatpush2.bf16.msra.mxu0 %v1168
      %1221 = vmatprep.subr.bf16.mxu0 0
      %1222 = vmatpush2.bf16.msra.mxu0 %v1167
      %1223 = vmatprep.mubr.bf16.mxu0 %v1057
      %1224 = vmatmul.mubr.bf16.gmra.mxu0 %v1029
      %v1225 = vpop.f32.mrf.mxu0
      %v1226 = vadd.f32 %v1094, %v1225
      %v1227 = vpop.f32.mrf.mxu0
      %v1228 = vpop.f32.mrf.mxu0
      %v1229 = vadd.f32 %v1094, %v1228
      %v1230 = vpop.f32.mrf.mxu0
      %1231 = vmatprep.mubr.bf16.mxu0 %v1061
      %1232 = vmatmul.mubr.bf16.gmra.mxu0 %v1032
      %v1233 = vpop.f32.mrf.mxu0
      %v1234 = vadd.f32 %v1094, %v1233
      %v1235 = vpop.f32.mrf.mxu0
      %v1236 = vpop.f32.mrf.mxu0
      %v1237 = vadd.f32 %v1094, %v1236
      %v1238 = vpop.f32.mrf.mxu0
      %1239 = vmatprep.mubr.bf16.mxu0 %v1065
      %1240 = vmatmul.mubr.bf16.gmra.mxu0 %v1035
      %v1241 = vpop.f32.mrf.mxu0
      %v1242 = vadd.f32 %v1094, %v1241
      %v1243 = vpop.f32.mrf.mxu0
      %v1244 = vpop.f32.mrf.mxu0
      %v1245 = vadd.f32 %v1094, %v1244
      %v1246 = vpop.f32.mrf.mxu0
      %1247 = vmatprep.mubr.bf16.mxu0 %v1069
      %1248 = vmatmul.mubr.bf16.gmra.mxu0 %v1038
      %v1249 = vpop.f32.mrf.mxu0
      %v1250 = vadd.f32 %v1094, %v1249
      %v1251 = vpop.f32.mrf.mxu0
      %v1252 = vpop.f32.mrf.mxu0
      %v1253 = vadd.f32 %v1094, %v1252
      %v1254 = vpop.f32.mrf.mxu0
      %1255 = vmatprep.mubr.bf16.mxu0 %v1073
      %1256 = vmatmul.mubr.bf16.gmra.mxu0 %v1041
      %v1257 = vpop.f32.mrf.mxu0
      %v1258 = vadd.f32 %v1094, %v1257
      %v1259 = vpop.f32.mrf.mxu0
      %v1260 = vpop.f32.mrf.mxu0
      %v1261 = vadd.f32 %v1094, %v1260
      %v1262 = vpop.f32.mrf.mxu0
      %1263 = vmatprep.mubr.bf16.mxu0 %v1077
      %1264 = vmatmul.mubr.bf16.gmra.mxu0 %v1044
      %v1265 = vpop.f32.mrf.mxu0
      %v1266 = vadd.f32 %v1094, %v1265
      %v1267 = vpop.f32.mrf.mxu0
      %v1268 = vpop.f32.mrf.mxu0
      %v1269 = vadd.f32 %v1094, %v1268
      %v1270 = vpop.f32.mrf.mxu0
      %1271 = vmatprep.mubr.bf16.mxu0 %v1081
      %1272 = vmatmul.mubr.bf16.gmra.mxu0 %v1047
      %v1273 = vpop.f32.mrf.mxu0
      %v1274 = vadd.f32 %v1094, %v1273
      %v1275 = vpop.f32.mrf.mxu0
      %v1276 = vpop.f32.mrf.mxu0
      %v1277 = vadd.f32 %v1094, %v1276
      %v1278 = vpop.f32.mrf.mxu0
      %1279 = vmatprep.mubr.bf16.mxu0 %v1085
      %1280 = vmatmul.mubr.bf16.gmra.mxu0 %v1050
      %v1281 = vpop.f32.mrf.mxu0
      %v1282 = vadd.f32 %v1094, %v1281
      %v1283 = vpop.f32.mrf.mxu0
      %v1284 = vpop.f32.mrf.mxu0
      %v1285 = vadd.f32 %v1094, %v1284
      %v1286 = vpop.f32.mrf.mxu0
      %1287 = vmatprep.mubr.bf16.mxu0 %v1089
      %1288 = vmatmul.mubr.bf16.gmra.mxu0 %v1053
      %v1289 = vpop.f32.mrf.mxu0
      %v1290 = vadd.f32 %v1094, %v1289
      %v1291 = vpop.f32.mrf.mxu0
      %v1292 = vpop.f32.mrf.mxu0
      %v1293 = vadd.f32 %v1094, %v1292
      %v1294 = vpop.f32.mrf.mxu0
      %1295 = vdwg.mxu0
      %v1296 = vmul.f32 %v1226, 0.01
      %v1297 = vmul.f32 %v1229, 0.01
      %v1298 = vmul.f32 %v1234, 0.01
      %v1299 = vmul.f32 %v1237, 0.01
      %v1300 = vmul.f32 %v1242, 0.01
      %v1301 = vmul.f32 %v1245, 0.01
      %v1302 = vmul.f32 %v1250, 0.01
      %v1303 = vmul.f32 %v1253, 0.01
      %v1304 = vmul.f32 %v1258, 0.01
      %v1305 = vmul.f32 %v1261, 0.01
      %v1306 = vmul.f32 %v1266, 0.01
      %v1307 = vmul.f32 %v1269, 0.01
      %v1308 = vmul.f32 %v1274, 0.01
      %v1309 = vmul.f32 %v1277, 0.01
      %v1310 = vmul.f32 %v1282, 0.01
      %v1311 = vmul.f32 %v1285, 0.01
      %v1312 = vmul.f32 %v1290, 0.01
      %v1313 = vmul.f32 %v1293, 0.01
      %v1314 = vmax.f32 %v1226, %v1296
      %v1315 = vmax.f32 %v1229, %v1297
      %v1316 = vmax.f32 %v1234, %v1298
      %v1317 = vmax.f32 %v1237, %v1299
      %v1318 = vmax.f32 %v1242, %v1300
      %v1319 = vmax.f32 %v1245, %v1301
      %v1320 = vmax.f32 %v1250, %v1302
      %v1321 = vmax.f32 %v1253, %v1303
      %v1322 = vmax.f32 %v1258, %v1304
      %v1323 = vmax.f32 %v1261, %v1305
      %v1324 = vmax.f32 %v1266, %v1306
      %v1325 = vmax.f32 %v1269, %v1307
      %v1326 = vmax.f32 %v1274, %v1308
      %v1327 = vmax.f32 %v1277, %v1309
      %v1328 = vmax.f32 %v1282, %v1310
      %v1329 = vmax.f32 %v1285, %v1311
      %v1330 = vmax.f32 %v1290, %v1312
      %v1331 = vmax.f32 %v1293, %v1313
      %v1332 = vpack.c.bf16 %v1315, %v1314
      %v1333 = vpack.c.bf16 %v1317, %v1316
      %v1334 = vpack.c.bf16 %v1319, %v1318
      %v1335 = vpack.c.bf16 %v1321, %v1320
      %v1336 = vpack.c.bf16 %v1323, %v1322
      %v1337 = vpack.c.bf16 %v1325, %v1324
      %v1338 = vpack.c.bf16 %v1327, %v1326
      %v1339 = vpack.c.bf16 %v1329, %v1328
      %v1340 = vpack.c.bf16 %v1331, %v1330
      %v1342 = vshrl.u32 %v1332, 16
      %v1344 = vshll.u32 %v1332, 16
      %v1346 = vrot.slane %v1344, 1
      %v1347 = vor.u32 %v1342, %v1346
      %v1349 = vshll.u32 %v1333, 16
      %v1351 = vrot.slane %v1349, 1
      %v1352 = vsel %vm354, %v1347, %v1351
      %v1353 = vshrl.u32 %v1333, 16
      %v1355 = vor.u32 %v1353, %v1351
      %v1357 = vshll.u32 %v1334, 16
      %v1359 = vrot.slane %v1357, 1
      %v1360 = vsel %vm354, %v1355, %v1359
      %v1361 = vshrl.u32 %v1334, 16
      %v1363 = vor.u32 %v1361, %v1359
      %v1365 = vshll.u32 %v1335, 16
      %v1367 = vrot.slane %v1365, 1
      %v1368 = vsel %vm354, %v1363, %v1367
      %v1369 = vshrl.u32 %v1335, 16
      %v1371 = vor.u32 %v1369, %v1367
      %v1373 = vshll.u32 %v1336, 16
      %v1375 = vrot.slane %v1373, 1
      %v1376 = vsel %vm354, %v1371, %v1375
      %v1377 = vshrl.u32 %v1336, 16
      %v1379 = vor.u32 %v1377, %v1375
      %v1381 = vshll.u32 %v1337, 16
      %v1383 = vrot.slane %v1381, 1
      %v1384 = vsel %vm354, %v1379, %v1383
      %v1385 = vshrl.u32 %v1337, 16
      %v1387 = vor.u32 %v1385, %v1383
      %v1389 = vshll.u32 %v1338, 16
      %v1391 = vrot.slane %v1389, 1
      %v1392 = vsel %vm354, %v1387, %v1391
      %v1393 = vshrl.u32 %v1338, 16
      %v1395 = vor.u32 %v1393, %v1391
      %v1397 = vshll.u32 %v1339, 16
      %v1399 = vrot.slane %v1397, 1
      %v1400 = vsel %vm354, %v1395, %v1399
      %v1401 = vshrl.u32 %v1339, 16
      %v1403 = vor.u32 %v1401, %v1399
      %v1405 = vshll.u32 %v1340, 16
      %v1407 = vrot.slane %v1405, 1
      %v1408 = vsel %vm354, %v1403, %v1407
      %1409 = vrot.lane.b32.xlu0 %v1352, 64
      %v1410 = vpop.permute.xlu0 %1409
      %1411 = vrot.lane.b32.xlu0 %v1360, 64
      %v1412 = vpop.permute.xlu0 %1411
      %1413 = vrot.lane.b32.xlu0 %v1368, 64
      %v1414 = vpop.permute.xlu0 %1413
      %1415 = vrot.lane.b32.xlu0 %v1376, 64
      %v1416 = vpop.permute.xlu0 %1415
      %1417 = vrot.lane.b32.xlu0 %v1384, 64
      %v1418 = vpop.permute.xlu0 %1417
      %1419 = vrot.lane.b32.xlu0 %v1392, 64
      %v1420 = vpop.permute.xlu0 %1419
      %1421 = vrot.lane.b32.xlu0 %v1400, 64
      %v1422 = vpop.permute.xlu0 %1421
      %1423 = vrot.lane.b32.xlu0 %v1408, 64
      %v1424 = vpop.permute.xlu0 %1423
      %v1434 = vrot.slane %v1332, 4
      %v1435 = vrot.slane %v1333, 4
      %v1436 = vsel %vm944, %v1434, %v1435
      %v1437 = vrot.slane %v1334, 4
      %v1438 = vsel %vm944, %v1435, %v1437
      %v1439 = vrot.slane %v1335, 4
      %v1440 = vsel %vm944, %v1437, %v1439
      %v1441 = vrot.slane %v1336, 4
      %v1442 = vsel %vm944, %v1439, %v1441
      %v1443 = vrot.slane %v1337, 4
      %v1444 = vsel %vm944, %v1441, %v1443
      %v1445 = vrot.slane %v1338, 4
      %v1446 = vsel %vm944, %v1443, %v1445
      %v1447 = vrot.slane %v1339, 4
      %v1448 = vsel %vm944, %v1445, %v1447
      %v1449 = vrot.slane %v1340, 4
      %v1450 = vsel %vm944, %v1447, %v1449
      %v1451 = vrot.slane %v1342, 4
      %v1452 = vrot.slane %v1344, 5
      %v1453 = vor.u32 %v1451, %v1452
      %v1454 = vrot.slane %v1353, 4
      %v1455 = vrot.slane %v1349, 5
      %v1456 = vor.u32 %v1454, %v1455
      %v1457 = vsel %vm964, %v1453, %v1456
      %v1458 = vrot.slane %v1361, 4
      %v1459 = vrot.slane %v1357, 5
      %v1460 = vor.u32 %v1458, %v1459
      %v1461 = vsel %vm964, %v1456, %v1460
      %v1462 = vrot.slane %v1369, 4
      %v1463 = vrot.slane %v1365, 5
      %v1464 = vor.u32 %v1462, %v1463
      %v1465 = vsel %vm964, %v1460, %v1464
      %v1466 = vrot.slane %v1377, 4
      %v1467 = vrot.slane %v1373, 5
      %v1468 = vor.u32 %v1466, %v1467
      %v1469 = vsel %vm964, %v1464, %v1468
      %v1470 = vrot.slane %v1385, 4
      %v1471 = vrot.slane %v1381, 5
      %v1472 = vor.u32 %v1470, %v1471
      %v1473 = vsel %vm964, %v1468, %v1472
      %v1474 = vrot.slane %v1393, 4
      %v1475 = vrot.slane %v1389, 5
      %v1476 = vor.u32 %v1474, %v1475
      %v1477 = vsel %vm964, %v1472, %v1476
      %v1478 = vrot.slane %v1401, 4
      %v1479 = vrot.slane %v1397, 5
      %v1480 = vor.u32 %v1478, %v1479
      %v1481 = vsel %vm964, %v1476, %v1480
      %v1482 = vshrl.u32 %v1340, 16
      %v1484 = vrot.slane %v1482, 4
      %v1485 = vrot.slane %v1405, 5
      %v1486 = vor.u32 %v1484, %v1485
      %v1487 = vsel %vm964, %v1480, %v1486
      %1488 = vrot.lane.b32.xlu0 %v1457, 64
      %v1489 = vpop.permute.xlu0 %1488
      %1490 = vrot.lane.b32.xlu0 %v1461, 64
      %v1491 = vpop.permute.xlu0 %1490
      %1492 = vrot.lane.b32.xlu0 %v1465, 64
      %v1493 = vpop.permute.xlu0 %1492
      %1494 = vrot.lane.b32.xlu0 %v1469, 64
      %v1495 = vpop.permute.xlu0 %1494
      %1496 = vrot.lane.b32.xlu0 %v1473, 64
      %v1497 = vpop.permute.xlu0 %1496
      %1498 = vrot.lane.b32.xlu0 %v1477, 64
      %v1499 = vpop.permute.xlu0 %1498
      %1500 = vrot.lane.b32.xlu0 %v1481, 64
      %v1501 = vpop.permute.xlu0 %1500
      %1502 = vrot.lane.b32.xlu0 %v1487, 64
      %v1503 = vpop.permute.xlu0 %1502
      %v1505 = vsel %vm1027, %v1332, %v1410
      %v1508 = vsel %vm1027, %v1333, %v1412
      %v1511 = vsel %vm1027, %v1334, %v1414
      %v1514 = vsel %vm1027, %v1335, %v1416
      %v1517 = vsel %vm1027, %v1336, %v1418
      %v1520 = vsel %vm1027, %v1337, %v1420
      %v1523 = vsel %vm1027, %v1338, %v1422
      %v1526 = vsel %vm1027, %v1339, %v1424
      %v1530 = vsel %vm1027, %v1436, %v1489
      %v1534 = vsel %vm1027, %v1438, %v1491
      %v1538 = vsel %vm1027, %v1440, %v1493
      %v1542 = vsel %vm1027, %v1442, %v1495
      %v1546 = vsel %vm1027, %v1444, %v1497
      %v1550 = vsel %vm1027, %v1446, %v1499
      %v1554 = vsel %vm1027, %v1448, %v1501
      %v1558 = vsel %vm1027, %v1450, %v1503
      %v1560 = vlaneseq
      %v1561 = vshrl.u32 %v1560, 7
      %v1562 = vsub.s32 2, %v1561
      %v1563 = vrot.slane %v269, %v1562
      %v1596 = vunpack.c.l.b16 %v234
      %v1597 = vunpack.c.l.b16 %v235
      %v1598 = vunpack.c.l.b16 %v236
      %v1599 = vunpack.c.l.b16 %v237
      %v1600 = vunpack.c.l.b16 %v238
      %v1601 = vunpack.c.l.b16 %v239
      %v1602 = vunpack.c.l.b16 %v240
      %v1603 = vunpack.c.l.b16 %v241
      %v1604 = vunpack.c.l.b16 %v242
      %v1605 = vunpack.c.l.b16 %v243
      %v1606 = vunpack.c.l.b16 %v244
      %v1607 = vunpack.c.l.b16 %v245
      %v1608 = vunpack.c.l.b16 %v246
      %v1609 = vunpack.c.l.b16 %v247
      %v1610 = vunpack.c.l.b16 %v248
      %v1611 = vunpack.c.l.b16 %v249
      %v1612 = vunpack.c.l.b16 %v250
      %v1613 = vunpack.c.l.b16 %v251
      %v1614 = vunpack.c.l.b16 %v252
      %v1615 = vunpack.c.l.b16 %v253
      %v1616 = vunpack.c.l.b16 %v254
      %v1617 = vunpack.c.l.b16 %v255
      %v1618 = vunpack.c.l.b16 %v256
      %v1619 = vunpack.c.l.b16 %v257
      %v1620 = vunpack.c.l.b16 %v258
      %v1621 = vunpack.c.l.b16 %v259
      %v1622 = vunpack.c.l.b16 %v260
      %v1623 = vunpack.c.l.b16 %v261
      %v1624 = vunpack.c.l.b16 %v262
      %v1625 = vunpack.c.l.b16 %v263
      %v1626 = vunpack.c.l.b16 %v264
      %v1627 = vunpack.c.l.b16 %v265
      %v1628 = vpack.c.b16 %v1597, %v1596
      %v1629 = vpack.c.b16 %v1599, %v1598
      %v1630 = vpack.c.b16 %v1601, %v1600
      %v1631 = vpack.c.b16 %v1603, %v1602
      %v1632 = vpack.c.b16 %v1605, %v1604
      %v1633 = vpack.c.b16 %v1607, %v1606
      %v1634 = vpack.c.b16 %v1609, %v1608
      %v1635 = vpack.c.b16 %v1611, %v1610
      %v1636 = vpack.c.b16 %v1613, %v1612
      %v1637 = vpack.c.b16 %v1615, %v1614
      %v1638 = vpack.c.b16 %v1617, %v1616
      %v1639 = vpack.c.b16 %v1619, %v1618
      %v1640 = vpack.c.b16 %v1621, %v1620
      %v1641 = vpack.c.b16 %v1623, %v1622
      %v1642 = vpack.c.b16 %v1625, %v1624
      %v1643 = vpack.c.b16 %v1627, %v1626
      %1660 = vmatprep.subr.bf16.mxu0 0
      %1661 = vmatpush1.bf16.msra.mxu0 %v1635
      %1662 = vmatprep.subr.bf16.mxu0 0
      %1663 = vmatpush1.bf16.msra.mxu0 %v1634
      %1664 = vmatprep.subr.bf16.mxu0 0
      %1665 = vmatpush1.bf16.msra.mxu0 %v1633
      %1666 = vmatprep.subr.bf16.mxu0 0
      %1667 = vmatpush1.bf16.msra.mxu0 %v1632
      %1668 = vmatprep.subr.bf16.mxu0 0
      %1669 = vmatpush1.bf16.msra.mxu0 %v1631
      %1670 = vmatprep.subr.bf16.mxu0 0
      %1671 = vmatpush1.bf16.msra.mxu0 %v1630
      %1672 = vmatprep.subr.bf16.mxu0 0
      %1673 = vmatpush1.bf16.msra.mxu0 %v1629
      %1674 = vmatprep.subr.bf16.mxu0 0
      %1675 = vmatpush1.bf16.msra.mxu0 %v1628
      %1676 = vmatprep.subr.bf16.mxu0 0
      %1677 = vmatpush2.bf16.msra.mxu0 %v1643
      %1678 = vmatprep.subr.bf16.mxu0 0
      %1679 = vmatpush2.bf16.msra.mxu0 %v1642
      %1680 = vmatprep.subr.bf16.mxu0 0
      %1681 = vmatpush2.bf16.msra.mxu0 %v1641
      %1682 = vmatprep.subr.bf16.mxu0 0
      %1683 = vmatpush2.bf16.msra.mxu0 %v1640
      %1684 = vmatprep.subr.bf16.mxu0 0
      %1685 = vmatpush2.bf16.msra.mxu0 %v1639
      %1686 = vmatprep.subr.bf16.mxu0 0
      %1687 = vmatpush2.bf16.msra.mxu0 %v1638
      %1688 = vmatprep.subr.bf16.mxu0 0
      %1689 = vmatpush2.bf16.msra.mxu0 %v1637
      %1690 = vmatprep.subr.bf16.mxu0 0
      %1691 = vmatpush2.bf16.msra.mxu0 %v1636
      %1692 = vmatprep.mubr.bf16.mxu0 %v1530
      %1693 = vmatmul.mubr.bf16.gmra.mxu0 %v1505
      %v1694 = vpop.f32.mrf.mxu0
      %v1695 = vadd.f32 %v1563, %v1694
      %v1696 = vpop.f32.mrf.mxu0
      %v1697 = vpop.f32.mrf.mxu0
      %v1698 = vadd.f32 %v1563, %v1697
      %v1699 = vpop.f32.mrf.mxu0
      %1700 = vmatprep.mubr.bf16.mxu0 %v1534
      %1701 = vmatmul.mubr.bf16.gmra.mxu0 %v1508
      %v1702 = vpop.f32.mrf.mxu0
      %v1703 = vadd.f32 %v1563, %v1702
      %v1704 = vpop.f32.mrf.mxu0
      %v1705 = vpop.f32.mrf.mxu0
      %v1706 = vadd.f32 %v1563, %v1705
      %v1707 = vpop.f32.mrf.mxu0
      %1708 = vmatprep.mubr.bf16.mxu0 %v1538
      %1709 = vmatmul.mubr.bf16.gmra.mxu0 %v1511
      %v1710 = vpop.f32.mrf.mxu0
      %v1711 = vadd.f32 %v1563, %v1710
      %v1712 = vpop.f32.mrf.mxu0
      %v1713 = vpop.f32.mrf.mxu0
      %v1714 = vadd.f32 %v1563, %v1713
      %v1715 = vpop.f32.mrf.mxu0
      %1716 = vmatprep.mubr.bf16.mxu0 %v1542
      %1717 = vmatmul.mubr.bf16.gmra.mxu0 %v1514
      %v1718 = vpop.f32.mrf.mxu0
      %v1719 = vadd.f32 %v1563, %v1718
      %v1720 = vpop.f32.mrf.mxu0
      %v1721 = vpop.f32.mrf.mxu0
      %v1722 = vadd.f32 %v1563, %v1721
      %v1723 = vpop.f32.mrf.mxu0
      %1724 = vmatprep.mubr.bf16.mxu0 %v1546
      %1725 = vmatmul.mubr.bf16.gmra.mxu0 %v1517
      %v1726 = vpop.f32.mrf.mxu0
      %v1727 = vadd.f32 %v1563, %v1726
      %v1728 = vpop.f32.mrf.mxu0
      %v1729 = vpop.f32.mrf.mxu0
      %v1730 = vadd.f32 %v1563, %v1729
      %v1731 = vpop.f32.mrf.mxu0
      %1732 = vmatprep.mubr.bf16.mxu0 %v1550
      %1733 = vmatmul.mubr.bf16.gmra.mxu0 %v1520
      %v1734 = vpop.f32.mrf.mxu0
      %v1735 = vadd.f32 %v1563, %v1734
      %v1736 = vpop.f32.mrf.mxu0
      %v1737 = vpop.f32.mrf.mxu0
      %v1738 = vadd.f32 %v1563, %v1737
      %v1739 = vpop.f32.mrf.mxu0
      %1740 = vmatprep.mubr.bf16.mxu0 %v1554
      %1741 = vmatmul.mubr.bf16.gmra.mxu0 %v1523
      %v1742 = vpop.f32.mrf.mxu0
      %v1743 = vadd.f32 %v1563, %v1742
      %v1744 = vpop.f32.mrf.mxu0
      %v1745 = vpop.f32.mrf.mxu0
      %v1746 = vadd.f32 %v1563, %v1745
      %v1747 = vpop.f32.mrf.mxu0
      %1748 = vmatprep.mubr.bf16.mxu0 %v1558
      %1749 = vmatmul.mubr.bf16.gmra.mxu0 %v1526
      %v1750 = vpop.f32.mrf.mxu0
      %v1751 = vadd.f32 %v1563, %v1750
      %v1752 = vpop.f32.mrf.mxu0
      %v1753 = vpop.f32.mrf.mxu0
      %v1754 = vadd.f32 %v1563, %v1753
      %v1755 = vpop.f32.mrf.mxu0
      %1756 = vdwg.mxu0
      %v1757 = vmul.f32 %v1695, 0.01
      %v1758 = vmul.f32 %v1698, 0.01
      %v1759 = vmul.f32 %v1703, 0.01
      %v1760 = vmul.f32 %v1706, 0.01
      %v1761 = vmul.f32 %v1711, 0.01
      %v1762 = vmul.f32 %v1714, 0.01
      %v1763 = vmul.f32 %v1719, 0.01
      %v1764 = vmul.f32 %v1722, 0.01
      %v1765 = vmul.f32 %v1727, 0.01
      %v1766 = vmul.f32 %v1730, 0.01
      %v1767 = vmul.f32 %v1735, 0.01
      %v1768 = vmul.f32 %v1738, 0.01
      %v1769 = vmul.f32 %v1743, 0.01
      %v1770 = vmul.f32 %v1746, 0.01
      %v1771 = vmul.f32 %v1751, 0.01
      %v1772 = vmul.f32 %v1754, 0.01
      %v1773 = vmax.f32 %v1695, %v1757
      %v1774 = vmax.f32 %v1698, %v1758
      %v1775 = vmax.f32 %v1703, %v1759
      %v1776 = vmax.f32 %v1706, %v1760
      %v1777 = vmax.f32 %v1711, %v1761
      %v1778 = vmax.f32 %v1714, %v1762
      %v1779 = vmax.f32 %v1719, %v1763
      %v1780 = vmax.f32 %v1722, %v1764
      %v1781 = vmax.f32 %v1727, %v1765
      %v1782 = vmax.f32 %v1730, %v1766
      %v1783 = vmax.f32 %v1735, %v1767
      %v1784 = vmax.f32 %v1738, %v1768
      %v1785 = vmax.f32 %v1743, %v1769
      %v1786 = vmax.f32 %v1746, %v1770
      %v1787 = vmax.f32 %v1751, %v1771
      %v1788 = vmax.f32 %v1754, %v1772
      %v1789 = vpack.c.bf16 %v1774, %v1773
      %v1790 = vpack.c.bf16 %v1776, %v1775
      %v1791 = vpack.c.bf16 %v1778, %v1777
      %v1792 = vpack.c.bf16 %v1780, %v1779
      %v1793 = vpack.c.bf16 %v1782, %v1781
      %v1794 = vpack.c.bf16 %v1784, %v1783
      %v1795 = vpack.c.bf16 %v1786, %v1785
      %v1796 = vpack.c.bf16 %v1788, %v1787
      %v1813 = vunpack.c.l.b16 %v270
      %v1814 = vunpack.c.l.b16 %v271
      %v1815 = vunpack.c.l.b16 %v272
      %v1816 = vunpack.c.l.b16 %v273
      %v1817 = vunpack.c.l.b16 %v274
      %v1818 = vunpack.c.l.b16 %v275
      %v1819 = vunpack.c.l.b16 %v276
      %v1820 = vunpack.c.l.b16 %v277
      %v1821 = vunpack.c.l.b16 %v278
      %v1822 = vunpack.c.l.b16 %v279
      %v1823 = vunpack.c.l.b16 %v280
      %v1824 = vunpack.c.l.b16 %v281
      %v1825 = vunpack.c.l.b16 %v282
      %v1826 = vunpack.c.l.b16 %v283
      %v1827 = vunpack.c.l.b16 %v284
      %v1828 = vunpack.c.l.b16 %v285
      %v1829 = vpack.c.b16 %v1814, %v1813
      %v1830 = vpack.c.b16 %v1816, %v1815
      %v1831 = vpack.c.b16 %v1818, %v1817
      %v1832 = vpack.c.b16 %v1820, %v1819
      %v1833 = vpack.c.b16 %v1822, %v1821
      %v1834 = vpack.c.b16 %v1824, %v1823
      %v1835 = vpack.c.b16 %v1826, %v1825
      %v1836 = vpack.c.b16 %v1828, %v1827
      %v1845 = vmul.bf16 %v1789, %v1829
      %v1846 = vmul.bf16 %v1790, %v1830
      %v1847 = vmul.bf16 %v1791, %v1831
      %v1848 = vmul.bf16 %v1792, %v1832
      %v1849 = vmul.bf16 %v1793, %v1833
      %v1850 = vmul.bf16 %v1794, %v1834
      %v1851 = vmul.bf16 %v1795, %v1835
      %v1852 = vmul.bf16 %v1796, %v1836
      %v1853 = vld [vmem:[%s3] sm:$0x1]
      %1854 = vmatprep.subr.bf16.mxu0 0
      %1855 = vmatpush1.bf16.msra.mxu0 %v1852
      %1856 = vmatprep.subr.bf16.mxu0 0
      %1857 = vmatpush1.bf16.msra.mxu0 %v1851
      %1858 = vmatprep.subr.bf16.mxu0 0
      %1859 = vmatpush1.bf16.msra.mxu0 %v1850
      %1860 = vmatprep.subr.bf16.mxu0 0
      %1861 = vmatpush1.bf16.msra.mxu0 %v1849
      %1862 = vmatprep.subr.bf16.mxu0 0
      %1863 = vmatpush1.bf16.msra.mxu0 %v1848
      %1864 = vmatprep.subr.bf16.mxu0 0
      %1865 = vmatpush1.bf16.msra.mxu0 %v1847
      %1866 = vmatprep.subr.bf16.mxu0 0
      %1867 = vmatpush1.bf16.msra.mxu0 %v1846
      %1868 = vmatprep.subr.bf16.mxu0 0
      %1869 = vmatpush1.bf16.msra.mxu0 %v1845
      %1870 = vmatprep.subr.bf16.mxu0 0
      %1871 = vmatpush2.bf16.msra.mxu0 0
      %1872 = vmatprep.subr.bf16.mxu0 0
      %1873 = vmatpush2.bf16.msra.mxu0 0
      %1874 = vmatprep.subr.bf16.mxu0 0
      %1875 = vmatpush2.bf16.msra.mxu0 0
      %1876 = vmatprep.subr.bf16.mxu0 0
      %1877 = vmatpush2.bf16.msra.mxu0 0
      %1878 = vmatprep.subr.bf16.mxu0 0
      %1879 = vmatpush2.bf16.msra.mxu0 0
      %1880 = vmatprep.subr.bf16.mxu0 0
      %1881 = vmatpush2.bf16.msra.mxu0 0
      %1882 = vmatprep.subr.bf16.mxu0 0
      %1883 = vmatpush2.bf16.msra.mxu0 0
      %1884 = vmatprep.subr.bf16.mxu0 0
      %1885 = vmatpush2.bf16.msra.mxu0 0
      %1886 = vmatprep.mubr.bf16.mxu0 0
      %1887 = vmatmul.mubr.bf16.gmra.mxu0 %v1853
      %v1888 = vpop.f32.mrf.mxu0
      %v1889 = vadd.f32 0.0, %v1888
      %v1890 = vpop.f32.mrf.mxu0
      %v1891 = vpop.f32.mrf.mxu0
      %v1892 = vpop.f32.mrf.mxu0
      %1893 = vdwg.mxu0
      %vm1894 = vcmask 516096
      %v1895 = vsel %vm1894, %v1889, 0.0
      %1896 = vadd.xlane.f32.xlu0 %v1895
      %v1897 = vpop.xlane.xlu0 %1896
      %s1898 = sld [smem:[#allocation2]]
      %v1899 = vstv %s1898
      %v1900 = vadd.f32 %v1897, %v1899
      %vm1901 = vcmask 0
      %1902 = vst.msk [vmem:[%s196] sm:$0x1] %vm1901, %v1900
      %p1903 = scmp.lt.s32.totalorder %s16, 1
      %s1904 = scalar_select %p1903, %s16, 1
      %s1905 = scalar_lea.vmem %s4, %s1904
      // Predicated region
      $region37: #{tpu_custom_call.1} parent=35 // pred_check
        %p1906 = pneg %p123
      $region38: #{tpu_custom_call.1} parent=35 // pred_check_branch
        %1908 = sbr.rel (%p1906) target = $region40
      $region39: #{tpu_custom_call.1} parent=35 // pred_region
        _
      $region40: #{tpu_custom_call.1} parent=35 // pred_fallthru
        _
    $region36: #{tpu_custom_call.1} parent=5 // pred_fallthru
      _
    %p1909 = scmp.le.s32.totalorder 2, %s11
    // Predicated region
    $region41: #{tpu_custom_call.1} parent=5 // pred_check
      %p1910 = pneg %p1909
    $region42: #{tpu_custom_call.1} parent=5 // pred_check_branch
      %1912 = sbr.rel (%p1910) target = $region44
    $region43: #{tpu_custom_call.1} parent=5 // pred_region
      %s1913 = ssub.s32 %s11, 2
      // Predicated region
      $region45: #{tpu_custom_call.1} parent=43 // pred_check
        %p1914 = pneg %p129
      $region46: #{tpu_custom_call.1} parent=43 // pred_check_branch
        %1916 = sbr.rel (%p1914) target = $region48
      $region47: #{tpu_custom_call.1} parent=43 // pred_region
        %p1917 = scmp.lt.s32.totalorder %s17, 1
        %s1918 = scalar_select %p1917, %s17, 1
        %s1919 = scalar_lea.vmem %s4, %s1918
      $region48: #{tpu_custom_call.1} parent=43 // pred_fallthru
        _
    $region44: #{tpu_custom_call.1} parent=5 // pred_fallthru
      _
  $region6: #{tpu_custom_call.1} parent=0 // loop_footer
    %s15 = sadd.s32 1, %s11
  $region7: #{tpu_custom_call.1} parent=0 // loop_footer_branch
    %10 = sbr.rel target = $region3
  $region8: #{tpu_custom_call.1} parent=0 // loop_exit
    _

</llo_original>
